<compile_context>
chip_gen: v6e
topology: v6e:2x2x1
jax: 0.10.0
libtpu: 0.0.40
codegen_flags: <defaults>
</compile_context>

<pallas_src>
import jax
import jax.numpy as jnp
from jax.experimental import pallas as pl
from jax.experimental.pallas import tpu as pltpu

NUM_FEATURES = 192
HIDDEN = 256
BUCK_NUM = 2

F_PAD = 256                      # padded feature / hidden width (multiple of 128)
HEADS_W = 3 * NUM_FEATURES       # fused head hidden width: 576 (multiple of 128)
OUT_PAD = 128                    # lane-dense packed output width (3*BUCK_NUM used)


def _round_up(n, m):
    return ((n + m - 1) // m) * m


def _network_kernel(x_ref, wf_ref, wh1_ref, wh2_ref, b_ref, out_ref):
    """One batch tile of the full forward pass.

    x_ref   : [TILE_B, F_PAD]            padded input
    wf_ref  : [3, F_PAD, F_PAD]          featureNet weights (zero padded)
    wh1_ref : [F_PAD, HEADS_W]           fused node|edge|density hidden weights
    wh2_ref : [HEADS_W, OUT_PAD]         block-diagonal head output weights
    b_ref   : [8, HEADS_W]               bias slab (row per layer, zero padded)
    out_ref : [TILE_B, OUT_PAD]          packed outputs (cols 0:6 meaningful)
    """

    def relu(v):
        return jnp.maximum(v, 0.0)

    def lin(h, w, bias_row, width):
        y = jnp.dot(h, w, preferred_element_type=jnp.float32)
        return y + b_ref[bias_row:bias_row + 1, 0:width]

    # featureNet: 192->256 -> 256->256 -> 256->192 (padded to 256), ReLU each
    h = relu(lin(x_ref[...], wf_ref[0], 0, F_PAD))
    h = relu(lin(h, wf_ref[1], 1, F_PAD))
    feat = relu(lin(h, wf_ref[2], 2, F_PAD))

    # fused head hidden layers: one [TILE_B,256] x [256,576] matmul + ReLU
    heads = relu(lin(feat, wh1_ref[...], 3, HEADS_W))

    # fused (block-diagonal) head output layers: one [TILE_B,576] x [576,128]
    out_ref[...] = lin(heads, wh2_ref[...], 4, OUT_PAD)


def pack_params(params):
    """Pack the 18 per-layer (w, b) arrays into 4 padded slabs for the kernel."""
    (fw1, fb1, fw2, fb2, fw3, fb3,
     nw1, nb1, nw2, nb2,
     ew1, eb1, ew2, eb2,
     dw1, db1, dw2, db2) = params

    F, H, BN = NUM_FEATURES, HIDDEN, BUCK_NUM

    wf = jnp.zeros((3, F_PAD, F_PAD), jnp.float32)
    wf = wf.at[0, :F, :H].set(fw1)
    wf = wf.at[1, :H, :H].set(fw2)
    wf = wf.at[2, :H, :F].set(fw3)

    wh1 = jnp.zeros((F_PAD, HEADS_W), jnp.float32)
    wh1 = wh1.at[:F, 0:F].set(nw1)
    wh1 = wh1.at[:F, F:2 * F].set(ew1)
    wh1 = wh1.at[:F, 2 * F:3 * F].set(dw1)

    wh2 = jnp.zeros((HEADS_W, OUT_PAD), jnp.float32)
    wh2 = wh2.at[0:F, 0:BN].set(nw2)
    wh2 = wh2.at[F:2 * F, BN:2 * BN].set(ew2)
    wh2 = wh2.at[2 * F:3 * F, 2 * BN:3 * BN].set(dw2)

    bias = jnp.zeros((8, HEADS_W), jnp.float32)
    bias = bias.at[0, :H].set(fb1[0])
    bias = bias.at[1, :H].set(fb2[0])
    bias = bias.at[2, :F].set(fb3[0])
    bias = bias.at[3, 0:F].set(nb1[0])
    bias = bias.at[3, F:2 * F].set(eb1[0])
    bias = bias.at[3, 2 * F:3 * F].set(db1[0])
    bias = bias.at[4, 0:BN].set(nb2[0])
    bias = bias.at[4, BN:2 * BN].set(eb2[0])
    bias = bias.at[4, 2 * BN:3 * BN].set(db2[0])

    return (wf, wh1, wh2, bias)


def network_forward(x, packed, *, tile_b=None):
    """Full Network forward pass in a single batch-tiled Pallas kernel.

    x: [B, 192] float32
    packed: output of pack_params(...)
    returns (pred_nodes, pred_edges, pred_density), each [B, BUCK_NUM]
    """
    wf, wh1, wh2, bias = packed
    B = x.shape[0]

    # Tile size: sized for v7x's 64 MiB VMEM (weights ~1.7 MiB resident,
    # tiles double-buffered) while staying under the 32 MiB scoped default.
    if tile_b is None:
        tile_b = min(512, _round_up(B, 8))
    tile_b = max(8, _round_up(tile_b, 8))
    b_pad = _round_up(B, tile_b)
    grid = (b_pad // tile_b,)

    # Zero-pad batch to a tile multiple and features 192 -> 256.
    x_p = jnp.zeros((b_pad, F_PAD), jnp.float32).at[:B, :NUM_FEATURES].set(x)

    out = pl.pallas_call(
        _network_kernel,
        out_shape=jax.ShapeDtypeStruct((b_pad, OUT_PAD), jnp.float32),
        grid=grid,
        in_specs=[
            pl.BlockSpec((tile_b, F_PAD), lambda i: (i, 0)),          # x tile
            pl.BlockSpec((3, F_PAD, F_PAD), lambda i: (0, 0, 0)),     # featureNet W
            pl.BlockSpec((F_PAD, HEADS_W), lambda i: (0, 0)),         # fused head W1
            pl.BlockSpec((HEADS_W, OUT_PAD), lambda i: (0, 0)),       # fused head W2
            pl.BlockSpec((8, HEADS_W), lambda i: (0, 0)),             # bias slab
        ],
        out_specs=pl.BlockSpec((tile_b, OUT_PAD), lambda i: (i, 0)),
        compiler_params=pltpu.CompilerParams(
            dimension_semantics=("parallel",),
        ),
    )(x_p, wf, wh1, wh2, bias)

    pred_nodes = out[:B, 0:BUCK_NUM]
    pred_edges = out[:B, BUCK_NUM:2 * BUCK_NUM]
    pred_density = out[:B, 2 * BUCK_NUM:3 * BUCK_NUM]
    return pred_nodes, pred_edges, pred_density


def init_params(key):
    """Deterministic synthetic parameter init (shapes follow the nn.Module).

    Each Linear is stored as w: [in, out], b: [1, out] so x @ w + b matches
    PyTorch's x @ W.T + b with W: [out, in].
    """
    layer_dims = [
        # featureNet
        (NUM_FEATURES, HIDDEN), (HIDDEN, HIDDEN), (HIDDEN, NUM_FEATURES),
        # nodeNet
        (NUM_FEATURES, NUM_FEATURES), (NUM_FEATURES, BUCK_NUM),
        # edgeNet
        (NUM_FEATURES, NUM_FEATURES), (NUM_FEATURES, BUCK_NUM),
        # graphDensity
        (NUM_FEATURES, NUM_FEATURES), (NUM_FEATURES, BUCK_NUM),
    ]
    params = []
    keys = jax.random.split(key, 2 * len(layer_dims))
    for i, (fan_in, fan_out) in enumerate(layer_dims):
        wk, bk = keys[2 * i], keys[2 * i + 1]
        scale = 1.0 / jnp.sqrt(jnp.float32(fan_in))
        w = jax.random.uniform(wk, (fan_in, fan_out), jnp.float32, -scale, scale)
        b = jax.random.uniform(bk, (1, fan_out), jnp.float32, -scale, scale)
        params.extend([w, b])
    return tuple(params)


def reference_forward(x, params):
    """Plain-JAX reference (unpacked per-layer params) for correctness checks."""
    p = list(params)

    def lin(h, i):
        return h @ p[2 * i] + p[2 * i + 1]

    h = jax.nn.relu(lin(x, 0))
    h = jax.nn.relu(lin(h, 1))
    feat = jax.nn.relu(lin(h, 2))
    nodes = lin(jax.nn.relu(lin(feat, 3)), 4)
    edges = lin(jax.nn.relu(lin(feat, 5)), 6)
    density = lin(jax.nn.relu(lin(feat, 7)), 8)
    return nodes, edges, density


if __name__ == "__main__":
    key = jax.random.PRNGKey(0)
    pkey, xkey = jax.random.split(key)
    params = init_params(pkey)
    packed = pack_params(params)

    # Small test: B not a multiple of the tile to exercise padding + multi-step grid.
    B = 20
    x = jax.random.normal(xkey, (B, NUM_FEATURES), jnp.float32)

    outs = network_forward(x, packed, tile_b=8)   # grid=(3,), ragged tail padded
    outs = jax.block_until_ready(outs)

    refs = reference_forward(x, params)
    for o, r in zip(outs, refs):
        assert o.shape == (B, BUCK_NUM)
        assert jnp.allclose(o, r, atol=1e-3, rtol=1e-3), float(jnp.max(jnp.abs(o - r)))

    print("KERNEL_OK")
</pallas_src>

<mosaic_0001>
module attributes {stable_mosaic.version = 11 : i64} {
  func.func @_network_kernel(%arg0: i32, %arg1: memref<8x256xf32, #tpu.memory_space<vmem>>, %arg2: memref<3x256x256xf32, #tpu.memory_space<vmem>>, %arg3: memref<256x576xf32, #tpu.memory_space<vmem>>, %arg4: memref<576x128xf32, #tpu.memory_space<vmem>>, %arg5: memref<8x576xf32, #tpu.memory_space<vmem>>, %arg6: memref<8x128xf32, #tpu.memory_space<vmem>>) attributes {dimension_semantics = [#tpu.dimension_semantics<parallel>], iteration_bounds = array<i64: 3>, scalar_prefetch = 0 : i64, scratch_operands = 0 : i64, tpu.core_type = #tpu.core_type<tc>, window_params = [{transform_indices = @transform_0, window_bounds = array<i64: 8, 256>}, {pipeline_mode = #tpu.pipeline_mode<synchronous>, transform_indices = @transform_1, window_bounds = array<i64: 3, 256, 256>}, {pipeline_mode = #tpu.pipeline_mode<synchronous>, transform_indices = @transform_2, window_bounds = array<i64: 256, 576>}, {pipeline_mode = #tpu.pipeline_mode<synchronous>, transform_indices = @transform_3, window_bounds = array<i64: 576, 128>}, {pipeline_mode = #tpu.pipeline_mode<synchronous>, transform_indices = @transform_4, window_bounds = array<i64: 8, 576>}, {transform_indices = @transform_5, window_bounds = array<i64: 8, 128>}]} {
    %c0 = arith.constant 0 : index
    %c0_0 = arith.constant 0 : index
    %0 = vector.load %arg1[%c0, %c0_0] : memref<8x256xf32, #tpu.memory_space<vmem>>, vector<8x256xf32>
    %c0_1 = arith.constant 0 : index
    %c0_2 = arith.constant 0 : index
    %c0_3 = arith.constant 0 : index
    %1 = vector.load %arg2[%c0_1, %c0_2, %c0_3] : memref<3x256x256xf32, #tpu.memory_space<vmem>>, vector<1x256x256xf32>
    %2 = vector.shape_cast %1 : vector<1x256x256xf32> to vector<256x256xf32>
    %cst = arith.constant dense<0.000000e+00> : vector<8x256xf32>
    %3 = tpu.matmul %0, %2, %cst {dimension_numbers = #tpu.dot_dimension_numbers<[1], [0], [0], [1], [0, 0, 1, 1], [], []>} : vector<8x256xf32>, vector<256x256xf32>, vector<8x256xf32> -> vector<8x256xf32>
    %c0_4 = arith.constant 0 : index
    %c0_5 = arith.constant 0 : index
    %4 = vector.load %arg5[%c0_4, %c0_5] : memref<8x576xf32, #tpu.memory_space<vmem>>, vector<1x256xf32>
    %5 = vector.broadcast %4 : vector<1x256xf32> to vector<8x256xf32>
    %6 = arith.addf %3, %5 : vector<8x256xf32>
    %cst_6 = arith.constant 0.000000e+00 : f32
    %7 = vector.broadcast %cst_6 : f32 to vector<8x256xf32>
    %8 = arith.maximumf %6, %7 : vector<8x256xf32>
    %c1 = arith.constant 1 : index
    %c0_7 = arith.constant 0 : index
    %c0_8 = arith.constant 0 : index
    %9 = vector.load %arg2[%c1, %c0_7, %c0_8] : memref<3x256x256xf32, #tpu.memory_space<vmem>>, vector<1x256x256xf32>
    %10 = vector.shape_cast %9 : vector<1x256x256xf32> to vector<256x256xf32>
    %cst_9 = arith.constant dense<0.000000e+00> : vector<8x256xf32>
    %11 = tpu.matmul %8, %10, %cst_9 {dimension_numbers = #tpu.dot_dimension_numbers<[1], [0], [0], [1], [0, 0, 1, 1], [], []>} : vector<8x256xf32>, vector<256x256xf32>, vector<8x256xf32> -> vector<8x256xf32>
    %c1_10 = arith.constant 1 : index
    %c0_11 = arith.constant 0 : index
    %12 = vector.load %arg5[%c1_10, %c0_11] : memref<8x576xf32, #tpu.memory_space<vmem>>, vector<1x256xf32>
    %13 = vector.broadcast %12 : vector<1x256xf32> to vector<8x256xf32>
    %14 = arith.addf %11, %13 : vector<8x256xf32>
    %cst_12 = arith.constant 0.000000e+00 : f32
    %15 = vector.broadcast %cst_12 : f32 to vector<8x256xf32>
    %16 = arith.maximumf %14, %15 : vector<8x256xf32>
    %c2 = arith.constant 2 : index
    %c0_13 = arith.constant 0 : index
    %c0_14 = arith.constant 0 : index
    %17 = vector.load %arg2[%c2, %c0_13, %c0_14] : memref<3x256x256xf32, #tpu.memory_space<vmem>>, vector<1x256x256xf32>
    %18 = vector.shape_cast %17 : vector<1x256x256xf32> to vector<256x256xf32>
    %cst_15 = arith.constant dense<0.000000e+00> : vector<8x256xf32>
    %19 = tpu.matmul %16, %18, %cst_15 {dimension_numbers = #tpu.dot_dimension_numbers<[1], [0], [0], [1], [0, 0, 1, 1], [], []>} : vector<8x256xf32>, vector<256x256xf32>, vector<8x256xf32> -> vector<8x256xf32>
    %c2_16 = arith.constant 2 : index
    %c0_17 = arith.constant 0 : index
    %20 = vector.load %arg5[%c2_16, %c0_17] : memref<8x576xf32, #tpu.memory_space<vmem>>, vector<1x256xf32>
    %21 = vector.broadcast %20 : vector<1x256xf32> to vector<8x256xf32>
    %22 = arith.addf %19, %21 : vector<8x256xf32>
    %cst_18 = arith.constant 0.000000e+00 : f32
    %23 = vector.broadcast %cst_18 : f32 to vector<8x256xf32>
    %24 = arith.maximumf %22, %23 : vector<8x256xf32>
    %c0_19 = arith.constant 0 : index
    %c0_20 = arith.constant 0 : index
    %25 = vector.load %arg3[%c0_19, %c0_20] : memref<256x576xf32, #tpu.memory_space<vmem>>, vector<256x576xf32>
    %cst_21 = arith.constant dense<0.000000e+00> : vector<8x576xf32>
    %26 = tpu.matmul %24, %25, %cst_21 {dimension_numbers = #tpu.dot_dimension_numbers<[1], [0], [0], [1], [0, 0, 1, 1], [], []>} : vector<8x256xf32>, vector<256x576xf32>, vector<8x576xf32> -> vector<8x576xf32>
    %c3 = arith.constant 3 : index
    %c0_22 = arith.constant 0 : index
    %27 = vector.load %arg5[%c3, %c0_22] : memref<8x576xf32, #tpu.memory_space<vmem>>, vector<1x576xf32>
    %28 = vector.broadcast %27 : vector<1x576xf32> to vector<8x576xf32>
    %29 = arith.addf %26, %28 : vector<8x576xf32>
    %cst_23 = arith.constant 0.000000e+00 : f32
    %30 = vector.broadcast %cst_23 : f32 to vector<8x576xf32>
    %31 = arith.maximumf %29, %30 : vector<8x576xf32>
    %c0_24 = arith.constant 0 : index
    %c0_25 = arith.constant 0 : index
    %32 = vector.load %arg4[%c0_24, %c0_25] : memref<576x128xf32, #tpu.memory_space<vmem>>, vector<576x128xf32>
    %cst_26 = arith.constant dense<0.000000e+00> : vector<8x128xf32>
    %33 = tpu.matmul %31, %32, %cst_26 {dimension_numbers = #tpu.dot_dimension_numbers<[1], [0], [0], [1], [0, 0, 1, 1], [], []>} : vector<8x576xf32>, vector<576x128xf32>, vector<8x128xf32> -> vector<8x128xf32>
    %c4 = arith.constant 4 : index
    %c0_27 = arith.constant 0 : index
    %34 = vector.load %arg5[%c4, %c0_27] : memref<8x576xf32, #tpu.memory_space<vmem>>, vector<1x128xf32>
    %35 = vector.broadcast %34 : vector<1x128xf32> to vector<8x128xf32>
    %36 = arith.addf %33, %35 : vector<8x128xf32>
    %c0_28 = arith.constant 0 : index
    %c0_29 = arith.constant 0 : index
    %37 = vector.load %arg6[%c0_28, %c0_29] : memref<8x128xf32, #tpu.memory_space<vmem>>, vector<8x128xf32>
    tpu.vector_store %arg6[%c0_28, %c0_29], %36 {strides = array<i32>} : memref<8x128xf32, #tpu.memory_space<vmem>>, vector<8x128xf32>,
    return
  }
  func.func @transform_0(%arg0: i32) -> (i32, i32) {
    %c0_i32 = arith.constant 0 : i32
    %c0_i32_0 = arith.constant 0 : i32
    return %arg0, %c0_i32 : i32, i32
  }
  func.func @transform_1(%arg0: i32) -> (i32, i32, i32) {
    %c0_i32 = arith.constant 0 : i32
    %c0_i32_0 = arith.constant 0 : i32
    %c0_i32_1 = arith.constant 0 : i32
    %c0_i32_2 = arith.constant 0 : i32
    return %c0_i32, %c0_i32_0, %c0_i32_1 : i32, i32, i32
  }
  func.func @transform_2(%arg0: i32) -> (i32, i32) {
    %c0_i32 = arith.constant 0 : i32
    %c0_i32_0 = arith.constant 0 : i32
    %c0_i32_1 = arith.constant 0 : i32
    return %c0_i32, %c0_i32_0 : i32, i32
  }
  func.func @transform_3(%arg0: i32) -> (i32, i32) {
    %c0_i32 = arith.constant 0 : i32
    %c0_i32_0 = arith.constant 0 : i32
    %c0_i32_1 = arith.constant 0 : i32
    return %c0_i32, %c0_i32_0 : i32, i32
  }
  func.func @transform_4(%arg0: i32) -> (i32, i32) {
    %c0_i32 = arith.constant 0 : i32
    %c0_i32_0 = arith.constant 0 : i32
    %c0_i32_1 = arith.constant 0 : i32
    return %c0_i32, %c0_i32_0 : i32, i32
  }
  func.func @transform_5(%arg0: i32) -> (i32, i32) {
    %c0_i32 = arith.constant 0 : i32
    %c0_i32_0 = arith.constant 0 : i32
    return %arg0, %c0_i32 : i32, i32
  }
}

</mosaic_0001>

<llo_original>
// kernel: tpu_custom_call.1
$region0: #{tpu_custom_call.1}
  #allocation0 [shape = 'u32[]', space=smem, size = 0x4, offset = 0x4, fixed_abs, tag = 'smem constant byte address 0x4 - core index']
  #allocation1 [shape = 'u32[144,128]{1,0:T(1,128)}', space=vmem, size = 0x12000, scoped, tag = 'internal scratch']
  %s0 = inlined_call_operand.vmem [shape: f32[24,256], index: 0, kind: input, shape index: {}]
  %s1 = inlined_call_operand.vmem [shape: f32[3,256,256], index: 1, kind: input, shape index: {}]
  %s2 = inlined_call_operand.vmem [shape: f32[256,576], index: 2, kind: input, shape index: {}]
  %s3 = inlined_call_operand.vmem [shape: f32[576,128], index: 3, kind: input, shape index: {}]
  %s4 = inlined_call_operand.vmem [shape: f32[8,576], index: 4, kind: input, shape index: {}]
  %s5 = inlined_call_operand.hbm [shape: f32[24,128], index: 5, kind: output, shape index: {}]
  %s6 = sld [smem:[#allocation0]]
  $region53: #{tpu_custom_call.1} parent=0
    _
  %s8 = ssub.s32 1, %s6
  %s9 = scalar_select 0, %s8, %s6
  $region1: #{tpu_custom_call.1} parent=0
    #allocation2 [shape = 'u8[8192]{0}', space=vmem, size = 0x2000, scoped, tag = 'output window, operand 0']
    #allocation3 [shape = 's32[2]{0}', space=sflag, size = 0x8, scoped, tag = 'scoped memory for tpu_custom_call.1']
    %10 = vsyncpa [#allocation3], 0
    %s11 = scalar_lea.sflag [#allocation3], 1
    %12 = vsyncpa %s11, 0
    loop: start=0, step=1, limit=5
    $region2: #{tpu_custom_call.1} parent=1 // loop_pre_header
      _
    $region3: #{tpu_custom_call.1} parent=1 // loop_header
      %s14 = sphi 0, %s18
      %p15 = scmp.ge.s32.totalorder %s14, 5
      %s24 = sphi 0, %s26
      %s27 = sphi 0, %s24
      %s28 = sphi 0, %s27
      %s44 = sphi 0, %s28
      %s48 = sphi 0, %s48
      %s50 = sphi 0, %s48
      %s51 = sphi 0, %s50
      %s65 = sphi 0, %s51
      %s69 = sphi 0, %s69
      %s71 = sphi 0, %s69
      %s72 = sphi 0, %s71
      %s86 = sphi 0, %s72
      %s90 = sphi 0, %s90
      %s92 = sphi 0, %s90
      %s93 = sphi 0, %s92
      %s107 = sphi 0, %s93
      %s111 = sphi 0, %s111
      %s113 = sphi 0, %s111
      %s114 = sphi 0, %s113
      %s128 = sphi 0, %s114
      %s134 = sphi 0, %s136
      %s137 = sphi 0, %s134
      %s138 = sphi 0, %s137
      %s154 = sphi 0, %s138
    $region4: #{tpu_custom_call.1} parent=1 // loop_header_branch
      %17 = sbr.rel (%p15) target = $region8
    $region5: #{tpu_custom_call.1} parent=1 // loop_body
      %s19 = ssub.s32 %s14, 1
      %s20 = ssub.s32 %s14, 2
      %s21 = sadd.s32 %s14, 1
      %s22 = ssub.s32 %s14, %s21
      %p23 = scmp.eq.s32.totalorder %s22, 0
      %s25 = sadd.s32 %s24, 1
      %s26 = scalar_select %p23, %s24, %s25
      %p29 = pneg %p23
      %p30 = scmp.eq.s32.totalorder %s14, 2
      %p31 = por %p29, %p30
      %p32 = scmp.ne.s32.totalorder %s24, %s27
      %p33 = scmp.eq.s32.totalorder %s14, 0
      %p34 = por %p32, %p33
      %p35 = scmp.ne.s32.totalorder %s24, %s27
      %p36 = scmp.eq.s32.totalorder %s19, 2
      %p37 = por %p35, %p36
      %p38 = scmp.ne.s32.totalorder %s27, %s28
      %p39 = scmp.eq.s32.totalorder %s19, 0
      %p40 = por %p38, %p39
      %p41 = scmp.ne.s32.totalorder %s27, %s28
      %p42 = scmp.eq.s32.totalorder %s20, 2
      %p43 = por %p41, %p42
      %p45 = scmp.ne.s32.totalorder %s28, %s44
      %p46 = scmp.eq.s32.totalorder %s20, 0
      %p47 = por %p45, %p46
      %s49 = sadd.s32 %s48, 1
      %p52 = scmp.eq.s32.totalorder %s14, 2
      %p53 = scmp.ne.s32.totalorder %s48, %s50
      %p54 = scmp.eq.s32.totalorder %s14, 0
      %p55 = por %p53, %p54
      %p56 = scmp.ne.s32.totalorder %s48, %s50
      %p57 = scmp.eq.s32.totalorder %s19, 2
      %p58 = por %p56, %p57
      %p59 = scmp.ne.s32.totalorder %s50, %s51
      %p60 = scmp.eq.s32.totalorder %s19, 0
      %p61 = por %p59, %p60
      %p62 = scmp.ne.s32.totalorder %s50, %s51
      %p63 = scmp.eq.s32.totalorder %s20, 2
      %p64 = por %p62, %p63
      %p66 = scmp.ne.s32.totalorder %s51, %s65
      %p67 = scmp.eq.s32.totalorder %s20, 0
      %p68 = por %p66, %p67
      %s70 = sadd.s32 %s69, 1
      %p73 = scmp.eq.s32.totalorder %s14, 2
      %p74 = scmp.ne.s32.totalorder %s69, %s71
      %p75 = scmp.eq.s32.totalorder %s14, 0
      %p76 = por %p74, %p75
      %p77 = scmp.ne.s32.totalorder %s69, %s71
      %p78 = scmp.eq.s32.totalorder %s19, 2
      %p79 = por %p77, %p78
      %p80 = scmp.ne.s32.totalorder %s71, %s72
      %p81 = scmp.eq.s32.totalorder %s19, 0
      %p82 = por %p80, %p81
      %p83 = scmp.ne.s32.totalorder %s71, %s72
      %p84 = scmp.eq.s32.totalorder %s20, 2
      %p85 = por %p83, %p84
      %p87 = scmp.ne.s32.totalorder %s72, %s86
      %p88 = scmp.eq.s32.totalorder %s20, 0
      %p89 = por %p87, %p88
      %s91 = sadd.s32 %s90, 1
      %p94 = scmp.eq.s32.totalorder %s14, 2
      %p95 = scmp.ne.s32.totalorder %s90, %s92
      %p96 = scmp.eq.s32.totalorder %s14, 0
      %p97 = por %p95, %p96
      %p98 = scmp.ne.s32.totalorder %s90, %s92
      %p99 = scmp.eq.s32.totalorder %s19, 2
      %p100 = por %p98, %p99
      %p101 = scmp.ne.s32.totalorder %s92, %s93
      %p102 = scmp.eq.s32.totalorder %s19, 0
      %p103 = por %p101, %p102
      %p104 = scmp.ne.s32.totalorder %s92, %s93
      %p105 = scmp.eq.s32.totalorder %s20, 2
      %p106 = por %p104, %p105
      %p108 = scmp.ne.s32.totalorder %s93, %s107
      %p109 = scmp.eq.s32.totalorder %s20, 0
      %p110 = por %p108, %p109
      %s112 = sadd.s32 %s111, 1
      %p115 = scmp.eq.s32.totalorder %s14, 2
      %p116 = scmp.ne.s32.totalorder %s111, %s113
      %p117 = scmp.eq.s32.totalorder %s14, 0
      %p118 = por %p116, %p117
      %p119 = scmp.ne.s32.totalorder %s111, %s113
      %p120 = scmp.eq.s32.totalorder %s19, 2
      %p121 = por %p119, %p120
      %p122 = scmp.ne.s32.totalorder %s113, %s114
      %p123 = scmp.eq.s32.totalorder %s19, 0
      %p124 = por %p122, %p123
      %p125 = scmp.ne.s32.totalorder %s113, %s114
      %p126 = scmp.eq.s32.totalorder %s20, 2
      %p127 = por %p125, %p126
      %p129 = scmp.ne.s32.totalorder %s114, %s128
      %p130 = scmp.eq.s32.totalorder %s20, 0
      %p131 = por %p129, %p130
      %s132 = ssub.s32 %s14, %s21
      %p133 = scmp.eq.s32.totalorder %s132, 0
      %s135 = sadd.s32 %s134, 1
      %s136 = scalar_select %p133, %s134, %s135
      %p139 = pneg %p133
      %p140 = scmp.eq.s32.totalorder %s14, 2
      %p141 = por %p139, %p140
      %p142 = scmp.ne.s32.totalorder %s134, %s137
      %p143 = scmp.eq.s32.totalorder %s14, 0
      %p144 = por %p142, %p143
      %p145 = scmp.ne.s32.totalorder %s134, %s137
      %p146 = scmp.eq.s32.totalorder %s19, 2
      %p147 = por %p145, %p146
      %p148 = scmp.ne.s32.totalorder %s137, %s138
      %p149 = scmp.eq.s32.totalorder %s19, 0
      %p150 = por %p148, %p149
      %p151 = scmp.ne.s32.totalorder %s137, %s138
      %p152 = scmp.eq.s32.totalorder %s20, 2
      %p153 = por %p151, %p152
      %p155 = scmp.ne.s32.totalorder %s138, %s154
      %p156 = scmp.eq.s32.totalorder %s20, 0
      %p157 = por %p155, %p156
      %p158 = scmp.le.s32.totalorder 1, %s14
      %p159 = scmp.lt.s32.totalorder %s14, 4
      %p160 = pnand %p158, %p159
      %p161 = pneg %p160
      // Predicated region
      $region9: #{tpu_custom_call.1} parent=5 // pred_check
        _
      $region10: #{tpu_custom_call.1} parent=5 // pred_check_branch
        %163 = sbr.rel (%p160) target = $region12
      $region11: #{tpu_custom_call.1} parent=5 // pred_region
        %s164 = ssub.s32 %s14, 1
        // Predicated region
        $region13: #{tpu_custom_call.1} parent=11 // pred_check
          %p165 = pneg %p61
        $region14: #{tpu_custom_call.1} parent=11 // pred_check_branch
          %167 = sbr.rel (%p165) target = $region16
        $region15: #{tpu_custom_call.1} parent=11 // pred_region
          _
        $region16: #{tpu_custom_call.1} parent=11 // pred_fallthru
          _
        // Predicated region
        $region17: #{tpu_custom_call.1} parent=11 // pred_check
          %p168 = pneg %p82
        $region18: #{tpu_custom_call.1} parent=11 // pred_check_branch
          %170 = sbr.rel (%p168) target = $region20
        $region19: #{tpu_custom_call.1} parent=11 // pred_region
          _
        $region20: #{tpu_custom_call.1} parent=11 // pred_fallthru
          _
        // Predicated region
        $region21: #{tpu_custom_call.1} parent=11 // pred_check
          %p171 = pneg %p103
        $region22: #{tpu_custom_call.1} parent=11 // pred_check_branch
          %173 = sbr.rel (%p171) target = $region24
        $region23: #{tpu_custom_call.1} parent=11 // pred_region
          _
        $region24: #{tpu_custom_call.1} parent=11 // pred_fallthru
          _
        // Predicated region
        $region25: #{tpu_custom_call.1} parent=11 // pred_check
          %p174 = pneg %p124
        $region26: #{tpu_custom_call.1} parent=11 // pred_check_branch
          %176 = sbr.rel (%p174) target = $region28
        $region27: #{tpu_custom_call.1} parent=11 // pred_region
          _
        $region28: #{tpu_custom_call.1} parent=11 // pred_fallthru
          _
      $region12: #{tpu_custom_call.1} parent=5 // pred_fallthru
        _
      %p177 = scmp.lt.s32.totalorder %s14, 3
      // Predicated region
      $region29: #{tpu_custom_call.1} parent=5 // pred_check
        %p178 = pneg %p177
      $region30: #{tpu_custom_call.1} parent=5 // pred_check_branch
        %180 = sbr.rel (%p178) target = $region32
      $region31: #{tpu_custom_call.1} parent=5 // pred_region
        // Predicated region
        $region33: #{tpu_custom_call.1} parent=31 // pred_check
          %p181 = pneg %p34
        $region34: #{tpu_custom_call.1} parent=31 // pred_check_branch
          %183 = sbr.rel (%p181) target = $region36
        $region35: #{tpu_custom_call.1} parent=31 // pred_region
          %p184 = scmp.lt.s32.totalorder %s14, 2
          %s185 = scalar_select %p184, %s14, 2
          %s186 = smul.addr %s185, 2
          %s187 = smul.addr %s186, 8
          %s188 = scalar_lea.vmem %s0, %s187
        $region36: #{tpu_custom_call.1} parent=31 // pred_fallthru
          _
      $region32: #{tpu_custom_call.1} parent=5 // pred_fallthru
        _
      %p189 = scmp.le.s32.totalorder 1, %s14
      %p190 = scmp.lt.s32.totalorder %s14, 4
      %p191 = pnand %p189, %p190
      %p192 = pneg %p191
      // Predicated region
      $region37: #{tpu_custom_call.1} parent=5 // pred_check
        _
      $region38: #{tpu_custom_call.1} parent=5 // pred_check_branch
        %194 = sbr.rel (%p191) target = $region40
      $region39: #{tpu_custom_call.1} parent=5 // pred_region
        %s195 = ssub.s32 %s14, 1
        %p196 = scmp.lt.s32.totalorder %s19, 2
        %s197 = scalar_select %p196, %s19, 2
        %s198 = smul.addr %s197, 2
        %s199 = smul.addr %s198, 8
        %s200 = scalar_lea.vmem %s0, %s199
        %p201 = pneg %p40
        %p202 = pneg %p37
        %p203 = pneg %p61
        %p204 = pneg %p58
        %p205 = pneg %p82
        %p206 = pneg %p79
        %p207 = pneg %p103
        %p208 = pneg %p100
        %p209 = pneg %p124
        %p210 = pneg %p121
        %p211 = pneg %p150
        %p212 = pneg %p147
        %s213 = sand.u32 %s137, 1
        %s214 = scalar_lea.sflag [#allocation3], %s213
        %s215 = sand.u32 %s137, 1
        %s216 = smul.addr %s215, 8
        %s217 = scalar_lea.vmem [#allocation2], %s216
        %p218 = scmp.lt.s32.totalorder %s19, 2
        %s219 = scalar_select %p218, %s19, 2
        %s220 = smul.addr %s219, 2
        %s221 = smul.addr %s220, 8
        %s222 = scalar_lea.vmem %s0, %s221
        %v223 = vld [vmem:[%s222] sm:$0xff]
        %v224 = vld [vmem:[%s222 + $0x8] sm:$0xff]
        %v225 = vld [vmem:[%s1] sm:$0xff]
        %v226 = vld [vmem:[%s1 + $0x8] sm:$0xff]
        %v227 = vld [vmem:[%s1 + $0x10] sm:$0xff]
        %v228 = vld [vmem:[%s1 + $0x18] sm:$0xff]
        %v229 = vld [vmem:[%s1 + $0x20] sm:$0xff]
        %v230 = vld [vmem:[%s1 + $0x28] sm:$0xff]
        %v231 = vld [vmem:[%s1 + $0x30] sm:$0xff]
        %v232 = vld [vmem:[%s1 + $0x38] sm:$0xff]
        %v233 = vld [vmem:[%s1 + $0x40] sm:$0xff]
        %v234 = vld [vmem:[%s1 + $0x48] sm:$0xff]
        %v235 = vld [vmem:[%s1 + $0x50] sm:$0xff]
        %v236 = vld [vmem:[%s1 + $0x58] sm:$0xff]
        %v237 = vld [vmem:[%s1 + $0x60] sm:$0xff]
        %v238 = vld [vmem:[%s1 + $0x68] sm:$0xff]
        %v239 = vld [vmem:[%s1 + $0x70] sm:$0xff]
        %v240 = vld [vmem:[%s1 + $0x78] sm:$0xff]
        %v241 = vld [vmem:[%s1 + $0x80] sm:$0xff]
        %v242 = vld [vmem:[%s1 + $0x88] sm:$0xff]
        %v243 = vld [vmem:[%s1 + $0x90] sm:$0xff]
        %v244 = vld [vmem:[%s1 + $0x98] sm:$0xff]
        %v245 = vld [vmem:[%s1 + $0xa0] sm:$0xff]
        %v246 = vld [vmem:[%s1 + $0xa8] sm:$0xff]
        %v247 = vld [vmem:[%s1 + $0xb0] sm:$0xff]
        %v248 = vld [vmem:[%s1 + $0xb8] sm:$0xff]
        %v249 = vld [vmem:[%s1 + $0xc0] sm:$0xff]
        %v250 = vld [vmem:[%s1 + $0xc8] sm:$0xff]
        %v251 = vld [vmem:[%s1 + $0xd0] sm:$0xff]
        %v252 = vld [vmem:[%s1 + $0xd8] sm:$0xff]
        %v253 = vld [vmem:[%s1 + $0xe0] sm:$0xff]
        %v254 = vld [vmem:[%s1 + $0xe8] sm:$0xff]
        %v255 = vld [vmem:[%s1 + $0xf0] sm:$0xff]
        %v256 = vld [vmem:[%s1 + $0xf8] sm:$0xff]
        %v257 = vld [vmem:[%s1 + $0x100] sm:$0xff]
        %v258 = vld [vmem:[%s1 + $0x108] sm:$0xff]
        %v259 = vld [vmem:[%s1 + $0x110] sm:$0xff]
        %v260 = vld [vmem:[%s1 + $0x118] sm:$0xff]
        %v261 = vld [vmem:[%s1 + $0x120] sm:$0xff]
        %v262 = vld [vmem:[%s1 + $0x128] sm:$0xff]
        %v263 = vld [vmem:[%s1 + $0x130] sm:$0xff]
        %v264 = vld [vmem:[%s1 + $0x138] sm:$0xff]
        %v265 = vld [vmem:[%s1 + $0x140] sm:$0xff]
        %v266 = vld [vmem:[%s1 + $0x148] sm:$0xff]
        %v267 = vld [vmem:[%s1 + $0x150] sm:$0xff]
        %v268 = vld [vmem:[%s1 + $0x158] sm:$0xff]
        %v269 = vld [vmem:[%s1 + $0x160] sm:$0xff]
        %v270 = vld [vmem:[%s1 + $0x168] sm:$0xff]
        %v271 = vld [vmem:[%s1 + $0x170] sm:$0xff]
        %v272 = vld [vmem:[%s1 + $0x178] sm:$0xff]
        %v273 = vld [vmem:[%s1 + $0x180] sm:$0xff]
        %v274 = vld [vmem:[%s1 + $0x188] sm:$0xff]
        %v275 = vld [vmem:[%s1 + $0x190] sm:$0xff]
        %v276 = vld [vmem:[%s1 + $0x198] sm:$0xff]
        %v277 = vld [vmem:[%s1 + $0x1a0] sm:$0xff]
        %v278 = vld [vmem:[%s1 + $0x1a8] sm:$0xff]
        %v279 = vld [vmem:[%s1 + $0x1b0] sm:$0xff]
        %v280 = vld [vmem:[%s1 + $0x1b8] sm:$0xff]
        %v281 = vld [vmem:[%s1 + $0x1c0] sm:$0xff]
        %v282 = vld [vmem:[%s1 + $0x1c8] sm:$0xff]
        %v283 = vld [vmem:[%s1 + $0x1d0] sm:$0xff]
        %v284 = vld [vmem:[%s1 + $0x1d8] sm:$0xff]
        %v285 = vld [vmem:[%s1 + $0x1e0] sm:$0xff]
        %v286 = vld [vmem:[%s1 + $0x1e8] sm:$0xff]
        %v287 = vld [vmem:[%s1 + $0x1f0] sm:$0xff]
        %v288 = vld [vmem:[%s1 + $0x1f8] sm:$0xff]
        %v289 = vld [vmem:[%s4] ss:$8 sm:$0x3]
        %v291 = vlaneseq
        %v292 = vshrl.u32 %v291, 7
        %v293 = vsub.s32 0, %v292
        %v294 = vrot.slane %v289, %v293
        %v295 = vlaneseq
        %v296 = vshrl.u32 %v295, 7
        %v297 = vsub.s32 1, %v296
        %v298 = vrot.slane %v289, %v297
        %301 = vmatprep.subr.mxu0 %v256
        %302 = vmatpush1.msra.mxu0 %v255
        %303 = vmatprep.subr.mxu0 %v254
        %304 = vmatpush1.msra.mxu0 %v253
        %305 = vmatprep.subr.mxu0 %v252
        %306 = vmatpush1.msra.mxu0 %v251
        %307 = vmatprep.subr.mxu0 %v250
        %308 = vmatpush1.msra.mxu0 %v249
        %309 = vmatprep.subr.mxu0 %v248
        %310 = vmatpush1.msra.mxu0 %v247
        %311 = vmatprep.subr.mxu0 %v246
        %312 = vmatpush1.msra.mxu0 %v245
        %313 = vmatprep.subr.mxu0 %v244
        %314 = vmatpush1.msra.mxu0 %v243
        %315 = vmatprep.subr.mxu0 %v242
        %316 = vmatpush1.msra.mxu0 %v241
        %317 = vmatprep.subr.mxu0 %v240
        %318 = vmatpush1.msra.mxu0 %v239
        %319 = vmatprep.subr.mxu0 %v238
        %320 = vmatpush1.msra.mxu0 %v237
        %321 = vmatprep.subr.mxu0 %v236
        %322 = vmatpush1.msra.mxu0 %v235
        %323 = vmatprep.subr.mxu0 %v234
        %324 = vmatpush1.msra.mxu0 %v233
        %325 = vmatprep.subr.mxu0 %v232
        %326 = vmatpush1.msra.mxu0 %v231
        %327 = vmatprep.subr.mxu0 %v230
        %328 = vmatpush1.msra.mxu0 %v229
        %329 = vmatprep.subr.mxu0 %v228
        %330 = vmatpush1.msra.mxu0 %v227
        %331 = vmatprep.subr.mxu0 %v226
        %332 = vmatpush1.msra.mxu0 %v225
        %333 = vmatprep.subr.mxu0 %v288
        %334 = vmatpush2.msra.mxu0 %v287
        %335 = vmatprep.subr.mxu0 %v286
        %336 = vmatpush2.msra.mxu0 %v285
        %337 = vmatprep.subr.mxu0 %v284
        %338 = vmatpush2.msra.mxu0 %v283
        %339 = vmatprep.subr.mxu0 %v282
        %340 = vmatpush2.msra.mxu0 %v281
        %341 = vmatprep.subr.mxu0 %v280
        %342 = vmatpush2.msra.mxu0 %v279
        %343 = vmatprep.subr.mxu0 %v278
        %344 = vmatpush2.msra.mxu0 %v277
        %345 = vmatprep.subr.mxu0 %v276
        %346 = vmatpush2.msra.mxu0 %v275
        %347 = vmatprep.subr.mxu0 %v274
        %348 = vmatpush2.msra.mxu0 %v273
        %349 = vmatprep.subr.mxu0 %v272
        %350 = vmatpush2.msra.mxu0 %v271
        %351 = vmatprep.subr.mxu0 %v270
        %352 = vmatpush2.msra.mxu0 %v269
        %353 = vmatprep.subr.mxu0 %v268
        %354 = vmatpush2.msra.mxu0 %v267
        %355 = vmatprep.subr.mxu0 %v266
        %356 = vmatpush2.msra.mxu0 %v265
        %357 = vmatprep.subr.mxu0 %v264
        %358 = vmatpush2.msra.mxu0 %v263
        %359 = vmatprep.subr.mxu0 %v262
        %360 = vmatpush2.msra.mxu0 %v261
        %361 = vmatprep.subr.mxu0 %v260
        %362 = vmatpush2.msra.mxu0 %v259
        %363 = vmatprep.subr.mxu0 %v258
        %364 = vmatpush2.msra.mxu0 %v257
        %365 = vmatprep.mubr.f32.mxu0 %v224
        %366 = vmatmul.mubr.f32.gmra.mxu0 %v223
        %v367 = vpop.f32.mrf.mxu0
        %v368 = vadd.f32 %v294, %v367
        %v369 = vpop.f32.mrf.mxu0
        %v370 = vadd.f32 %v298, %v369
        %371 = vdwg.mxu0
        %v372 = vmax.f32 %v368, 0.0
        %v373 = vmax.f32 %v370, 0.0
        %s374 = scalar_lea.vmem %s1, 512
        %v375 = vld [vmem:[%s374] sm:$0xff]
        %v376 = vld [vmem:[%s374 + $0x8] sm:$0xff]
        %v377 = vld [vmem:[%s374 + $0x10] sm:$0xff]
        %v378 = vld [vmem:[%s374 + $0x18] sm:$0xff]
        %v379 = vld [vmem:[%s374 + $0x20] sm:$0xff]
        %v380 = vld [vmem:[%s374 + $0x28] sm:$0xff]
        %v381 = vld [vmem:[%s374 + $0x30] sm:$0xff]
        %v382 = vld [vmem:[%s374 + $0x38] sm:$0xff]
        %v383 = vld [vmem:[%s374 + $0x40] sm:$0xff]
        %v384 = vld [vmem:[%s374 + $0x48] sm:$0xff]
        %v385 = vld [vmem:[%s374 + $0x50] sm:$0xff]
        %v386 = vld [vmem:[%s374 + $0x58] sm:$0xff]
        %v387 = vld [vmem:[%s374 + $0x60] sm:$0xff]
        %v388 = vld [vmem:[%s374 + $0x68] sm:$0xff]
        %v389 = vld [vmem:[%s374 + $0x70] sm:$0xff]
        %v390 = vld [vmem:[%s374 + $0x78] sm:$0xff]
        %v391 = vld [vmem:[%s374 + $0x80] sm:$0xff]
        %v392 = vld [vmem:[%s374 + $0x88] sm:$0xff]
        %v393 = vld [vmem:[%s374 + $0x90] sm:$0xff]
        %v394 = vld [vmem:[%s374 + $0x98] sm:$0xff]
        %v395 = vld [vmem:[%s374 + $0xa0] sm:$0xff]
        %v396 = vld [vmem:[%s374 + $0xa8] sm:$0xff]
        %v397 = vld [vmem:[%s374 + $0xb0] sm:$0xff]
        %v398 = vld [vmem:[%s374 + $0xb8] sm:$0xff]
        %v399 = vld [vmem:[%s374 + $0xc0] sm:$0xff]
        %v400 = vld [vmem:[%s374 + $0xc8] sm:$0xff]
        %v401 = vld [vmem:[%s374 + $0xd0] sm:$0xff]
        %v402 = vld [vmem:[%s374 + $0xd8] sm:$0xff]
        %v403 = vld [vmem:[%s374 + $0xe0] sm:$0xff]
        %v404 = vld [vmem:[%s374 + $0xe8] sm:$0xff]
        %v405 = vld [vmem:[%s374 + $0xf0] sm:$0xff]
        %v406 = vld [vmem:[%s374 + $0xf8] sm:$0xff]
        %v407 = vld [vmem:[%s374 + $0x100] sm:$0xff]
        %v408 = vld [vmem:[%s374 + $0x108] sm:$0xff]
        %v409 = vld [vmem:[%s374 + $0x110] sm:$0xff]
        %v410 = vld [vmem:[%s374 + $0x118] sm:$0xff]
        %v411 = vld [vmem:[%s374 + $0x120] sm:$0xff]
        %v412 = vld [vmem:[%s374 + $0x128] sm:$0xff]
        %v413 = vld [vmem:[%s374 + $0x130] sm:$0xff]
        %v414 = vld [vmem:[%s374 + $0x138] sm:$0xff]
        %v415 = vld [vmem:[%s374 + $0x140] sm:$0xff]
        %v416 = vld [vmem:[%s374 + $0x148] sm:$0xff]
        %v417 = vld [vmem:[%s374 + $0x150] sm:$0xff]
        %v418 = vld [vmem:[%s374 + $0x158] sm:$0xff]
        %v419 = vld [vmem:[%s374 + $0x160] sm:$0xff]
        %v420 = vld [vmem:[%s374 + $0x168] sm:$0xff]
        %v421 = vld [vmem:[%s374 + $0x170] sm:$0xff]
        %v422 = vld [vmem:[%s374 + $0x178] sm:$0xff]
        %v423 = vld [vmem:[%s374 + $0x180] sm:$0xff]
        %v424 = vld [vmem:[%s374 + $0x188] sm:$0xff]
        %v425 = vld [vmem:[%s374 + $0x190] sm:$0xff]
        %v426 = vld [vmem:[%s374 + $0x198] sm:$0xff]
        %v427 = vld [vmem:[%s374 + $0x1a0] sm:$0xff]
        %v428 = vld [vmem:[%s374 + $0x1a8] sm:$0xff]
        %v429 = vld [vmem:[%s374 + $0x1b0] sm:$0xff]
        %v430 = vld [vmem:[%s374 + $0x1b8] sm:$0xff]
        %v431 = vld [vmem:[%s374 + $0x1c0] sm:$0xff]
        %v432 = vld [vmem:[%s374 + $0x1c8] sm:$0xff]
        %v433 = vld [vmem:[%s374 + $0x1d0] sm:$0xff]
        %v434 = vld [vmem:[%s374 + $0x1d8] sm:$0xff]
        %v435 = vld [vmem:[%s374 + $0x1e0] sm:$0xff]
        %v436 = vld [vmem:[%s374 + $0x1e8] sm:$0xff]
        %v437 = vld [vmem:[%s374 + $0x1f0] sm:$0xff]
        %v438 = vld [vmem:[%s374 + $0x1f8] sm:$0xff]
        %s439 = scalar_lea.vmem %s4, 1
        %v440 = vld [vmem:[%s439] ss:$8 sm:$0x3]
        %v442 = vlaneseq
        %v443 = vshrl.u32 %v442, 7
        %v444 = vsub.s32 0, %v443
        %v445 = vrot.slane %v440, %v444
        %v446 = vlaneseq
        %v447 = vshrl.u32 %v446, 7
        %v448 = vsub.s32 1, %v447
        %v449 = vrot.slane %v440, %v448
        %452 = vmatprep.subr.mxu0 %v406
        %453 = vmatpush1.msra.mxu0 %v405
        %454 = vmatprep.subr.mxu0 %v404
        %455 = vmatpush1.msra.mxu0 %v403
        %456 = vmatprep.subr.mxu0 %v402
        %457 = vmatpush1.msra.mxu0 %v401
        %458 = vmatprep.subr.mxu0 %v400
        %459 = vmatpush1.msra.mxu0 %v399
        %460 = vmatprep.subr.mxu0 %v398
        %461 = vmatpush1.msra.mxu0 %v397
        %462 = vmatprep.subr.mxu0 %v396
        %463 = vmatpush1.msra.mxu0 %v395
        %464 = vmatprep.subr.mxu0 %v394
        %465 = vmatpush1.msra.mxu0 %v393
        %466 = vmatprep.subr.mxu0 %v392
        %467 = vmatpush1.msra.mxu0 %v391
        %468 = vmatprep.subr.mxu0 %v390
        %469 = vmatpush1.msra.mxu0 %v389
        %470 = vmatprep.subr.mxu0 %v388
        %471 = vmatpush1.msra.mxu0 %v387
        %472 = vmatprep.subr.mxu0 %v386
        %473 = vmatpush1.msra.mxu0 %v385
        %474 = vmatprep.subr.mxu0 %v384
        %475 = vmatpush1.msra.mxu0 %v383
        %476 = vmatprep.subr.mxu0 %v382
        %477 = vmatpush1.msra.mxu0 %v381
        %478 = vmatprep.subr.mxu0 %v380
        %479 = vmatpush1.msra.mxu0 %v379
        %480 = vmatprep.subr.mxu0 %v378
        %481 = vmatpush1.msra.mxu0 %v377
        %482 = vmatprep.subr.mxu0 %v376
        %483 = vmatpush1.msra.mxu0 %v375
        %484 = vmatprep.subr.mxu0 %v438
        %485 = vmatpush2.msra.mxu0 %v437
        %486 = vmatprep.subr.mxu0 %v436
        %487 = vmatpush2.msra.mxu0 %v435
        %488 = vmatprep.subr.mxu0 %v434
        %489 = vmatpush2.msra.mxu0 %v433
        %490 = vmatprep.subr.mxu0 %v432
        %491 = vmatpush2.msra.mxu0 %v431
        %492 = vmatprep.subr.mxu0 %v430
        %493 = vmatpush2.msra.mxu0 %v429
        %494 = vmatprep.subr.mxu0 %v428
        %495 = vmatpush2.msra.mxu0 %v427
        %496 = vmatprep.subr.mxu0 %v426
        %497 = vmatpush2.msra.mxu0 %v425
        %498 = vmatprep.subr.mxu0 %v424
        %499 = vmatpush2.msra.mxu0 %v423
        %500 = vmatprep.subr.mxu0 %v422
        %501 = vmatpush2.msra.mxu0 %v421
        %502 = vmatprep.subr.mxu0 %v420
        %503 = vmatpush2.msra.mxu0 %v419
        %504 = vmatprep.subr.mxu0 %v418
        %505 = vmatpush2.msra.mxu0 %v417
        %506 = vmatprep.subr.mxu0 %v416
        %507 = vmatpush2.msra.mxu0 %v415
        %508 = vmatprep.subr.mxu0 %v414
        %509 = vmatpush2.msra.mxu0 %v413
        %510 = vmatprep.subr.mxu0 %v412
        %511 = vmatpush2.msra.mxu0 %v411
        %512 = vmatprep.subr.mxu0 %v410
        %513 = vmatpush2.msra.mxu0 %v409
        %514 = vmatprep.subr.mxu0 %v408
        %515 = vmatpush2.msra.mxu0 %v407
        %516 = vmatprep.mubr.f32.mxu0 %v373
        %517 = vmatmul.mubr.f32.gmra.mxu0 %v372
        %v518 = vpop.f32.mrf.mxu0
        %v519 = vadd.f32 %v445, %v518
        %v520 = vpop.f32.mrf.mxu0
        %v521 = vadd.f32 %v449, %v520
        %522 = vdwg.mxu0
        %v523 = vmax.f32 %v519, 0.0
        %v524 = vmax.f32 %v521, 0.0
        %s525 = scalar_lea.vmem %s1, 1024
        %v526 = vld [vmem:[%s525] sm:$0xff]
        %v527 = vld [vmem:[%s525 + $0x8] sm:$0xff]
        %v528 = vld [vmem:[%s525 + $0x10] sm:$0xff]
        %v529 = vld [vmem:[%s525 + $0x18] sm:$0xff]
        %v530 = vld [vmem:[%s525 + $0x20] sm:$0xff]
        %v531 = vld [vmem:[%s525 + $0x28] sm:$0xff]
        %v532 = vld [vmem:[%s525 + $0x30] sm:$0xff]
        %v533 = vld [vmem:[%s525 + $0x38] sm:$0xff]
        %v534 = vld [vmem:[%s525 + $0x40] sm:$0xff]
        %v535 = vld [vmem:[%s525 + $0x48] sm:$0xff]
        %v536 = vld [vmem:[%s525 + $0x50] sm:$0xff]
        %v537 = vld [vmem:[%s525 + $0x58] sm:$0xff]
        %v538 = vld [vmem:[%s525 + $0x60] sm:$0xff]
        %v539 = vld [vmem:[%s525 + $0x68] sm:$0xff]
        %v540 = vld [vmem:[%s525 + $0x70] sm:$0xff]
        %v541 = vld [vmem:[%s525 + $0x78] sm:$0xff]
        %v542 = vld [vmem:[%s525 + $0x80] sm:$0xff]
        %v543 = vld [vmem:[%s525 + $0x88] sm:$0xff]
        %v544 = vld [vmem:[%s525 + $0x90] sm:$0xff]
        %v545 = vld [vmem:[%s525 + $0x98] sm:$0xff]
        %v546 = vld [vmem:[%s525 + $0xa0] sm:$0xff]
        %v547 = vld [vmem:[%s525 + $0xa8] sm:$0xff]
        %v548 = vld [vmem:[%s525 + $0xb0] sm:$0xff]
        %v549 = vld [vmem:[%s525 + $0xb8] sm:$0xff]
        %v550 = vld [vmem:[%s525 + $0xc0] sm:$0xff]
        %v551 = vld [vmem:[%s525 + $0xc8] sm:$0xff]
        %v552 = vld [vmem:[%s525 + $0xd0] sm:$0xff]
        %v553 = vld [vmem:[%s525 + $0xd8] sm:$0xff]
        %v554 = vld [vmem:[%s525 + $0xe0] sm:$0xff]
        %v555 = vld [vmem:[%s525 + $0xe8] sm:$0xff]
        %v556 = vld [vmem:[%s525 + $0xf0] sm:$0xff]
        %v557 = vld [vmem:[%s525 + $0xf8] sm:$0xff]
        %v558 = vld [vmem:[%s525 + $0x100] sm:$0xff]
        %v559 = vld [vmem:[%s525 + $0x108] sm:$0xff]
        %v560 = vld [vmem:[%s525 + $0x110] sm:$0xff]
        %v561 = vld [vmem:[%s525 + $0x118] sm:$0xff]
        %v562 = vld [vmem:[%s525 + $0x120] sm:$0xff]
        %v563 = vld [vmem:[%s525 + $0x128] sm:$0xff]
        %v564 = vld [vmem:[%s525 + $0x130] sm:$0xff]
        %v565 = vld [vmem:[%s525 + $0x138] sm:$0xff]
        %v566 = vld [vmem:[%s525 + $0x140] sm:$0xff]
        %v567 = vld [vmem:[%s525 + $0x148] sm:$0xff]
        %v568 = vld [vmem:[%s525 + $0x150] sm:$0xff]
        %v569 = vld [vmem:[%s525 + $0x158] sm:$0xff]
        %v570 = vld [vmem:[%s525 + $0x160] sm:$0xff]
        %v571 = vld [vmem:[%s525 + $0x168] sm:$0xff]
        %v572 = vld [vmem:[%s525 + $0x170] sm:$0xff]
        %v573 = vld [vmem:[%s525 + $0x178] sm:$0xff]
        %v574 = vld [vmem:[%s525 + $0x180] sm:$0xff]
        %v575 = vld [vmem:[%s525 + $0x188] sm:$0xff]
        %v576 = vld [vmem:[%s525 + $0x190] sm:$0xff]
        %v577 = vld [vmem:[%s525 + $0x198] sm:$0xff]
        %v578 = vld [vmem:[%s525 + $0x1a0] sm:$0xff]
        %v579 = vld [vmem:[%s525 + $0x1a8] sm:$0xff]
        %v580 = vld [vmem:[%s525 + $0x1b0] sm:$0xff]
        %v581 = vld [vmem:[%s525 + $0x1b8] sm:$0xff]
        %v582 = vld [vmem:[%s525 + $0x1c0] sm:$0xff]
        %v583 = vld [vmem:[%s525 + $0x1c8] sm:$0xff]
        %v584 = vld [vmem:[%s525 + $0x1d0] sm:$0xff]
        %v585 = vld [vmem:[%s525 + $0x1d8] sm:$0xff]
        %v586 = vld [vmem:[%s525 + $0x1e0] sm:$0xff]
        %v587 = vld [vmem:[%s525 + $0x1e8] sm:$0xff]
        %v588 = vld [vmem:[%s525 + $0x1f0] sm:$0xff]
        %v589 = vld [vmem:[%s525 + $0x1f8] sm:$0xff]
        %s590 = scalar_lea.vmem %s4, 2
        %v591 = vld [vmem:[%s590] ss:$8 sm:$0x3]
        %v593 = vlaneseq
        %v594 = vshrl.u32 %v593, 7
        %v595 = vsub.s32 0, %v594
        %v596 = vrot.slane %v591, %v595
        %v597 = vlaneseq
        %v598 = vshrl.u32 %v597, 7
        %v599 = vsub.s32 1, %v598
        %v600 = vrot.slane %v591, %v599
        %603 = vmatprep.subr.mxu0 %v557
        %604 = vmatpush1.msra.mxu0 %v556
        %605 = vmatprep.subr.mxu0 %v555
        %606 = vmatpush1.msra.mxu0 %v554
        %607 = vmatprep.subr.mxu0 %v553
        %608 = vmatpush1.msra.mxu0 %v552
        %609 = vmatprep.subr.mxu0 %v551
        %610 = vmatpush1.msra.mxu0 %v550
        %611 = vmatprep.subr.mxu0 %v549
        %612 = vmatpush1.msra.mxu0 %v548
        %613 = vmatprep.subr.mxu0 %v547
        %614 = vmatpush1.msra.mxu0 %v546
        %615 = vmatprep.subr.mxu0 %v545
        %616 = vmatpush1.msra.mxu0 %v544
        %617 = vmatprep.subr.mxu0 %v543
        %618 = vmatpush1.msra.mxu0 %v542
        %619 = vmatprep.subr.mxu0 %v541
        %620 = vmatpush1.msra.mxu0 %v540
        %621 = vmatprep.subr.mxu0 %v539
        %622 = vmatpush1.msra.mxu0 %v538
        %623 = vmatprep.subr.mxu0 %v537
        %624 = vmatpush1.msra.mxu0 %v536
        %625 = vmatprep.subr.mxu0 %v535
        %626 = vmatpush1.msra.mxu0 %v534
        %627 = vmatprep.subr.mxu0 %v533
        %628 = vmatpush1.msra.mxu0 %v532
        %629 = vmatprep.subr.mxu0 %v531
        %630 = vmatpush1.msra.mxu0 %v530
        %631 = vmatprep.subr.mxu0 %v529
        %632 = vmatpush1.msra.mxu0 %v528
        %633 = vmatprep.subr.mxu0 %v527
        %634 = vmatpush1.msra.mxu0 %v526
        %635 = vmatprep.subr.mxu0 %v589
        %636 = vmatpush2.msra.mxu0 %v588
        %637 = vmatprep.subr.mxu0 %v587
        %638 = vmatpush2.msra.mxu0 %v586
        %639 = vmatprep.subr.mxu0 %v585
        %640 = vmatpush2.msra.mxu0 %v584
        %641 = vmatprep.subr.mxu0 %v583
        %642 = vmatpush2.msra.mxu0 %v582
        %643 = vmatprep.subr.mxu0 %v581
        %644 = vmatpush2.msra.mxu0 %v580
        %645 = vmatprep.subr.mxu0 %v579
        %646 = vmatpush2.msra.mxu0 %v578
        %647 = vmatprep.subr.mxu0 %v577
        %648 = vmatpush2.msra.mxu0 %v576
        %649 = vmatprep.subr.mxu0 %v575
        %650 = vmatpush2.msra.mxu0 %v574
        %651 = vmatprep.subr.mxu0 %v573
        %652 = vmatpush2.msra.mxu0 %v572
        %653 = vmatprep.subr.mxu0 %v571
        %654 = vmatpush2.msra.mxu0 %v570
        %655 = vmatprep.subr.mxu0 %v569
        %656 = vmatpush2.msra.mxu0 %v568
        %657 = vmatprep.subr.mxu0 %v567
        %658 = vmatpush2.msra.mxu0 %v566
        %659 = vmatprep.subr.mxu0 %v565
        %660 = vmatpush2.msra.mxu0 %v564
        %661 = vmatprep.subr.mxu0 %v563
        %662 = vmatpush2.msra.mxu0 %v562
        %663 = vmatprep.subr.mxu0 %v561
        %664 = vmatpush2.msra.mxu0 %v560
        %665 = vmatprep.subr.mxu0 %v559
        %666 = vmatpush2.msra.mxu0 %v558
        %667 = vmatprep.mubr.f32.mxu0 %v524
        %668 = vmatmul.mubr.f32.gmra.mxu0 %v523
        %v669 = vpop.f32.mrf.mxu0
        %v670 = vadd.f32 %v596, %v669
        %v671 = vpop.f32.mrf.mxu0
        %v672 = vadd.f32 %v600, %v671
        %673 = vdwg.mxu0
        %v674 = vmax.f32 %v670, 0.0
        %v675 = vmax.f32 %v672, 0.0
        %v676 = vld [vmem:[%s2] sm:$0xff]
        %v677 = vld [vmem:[%s2 + $0x8] sm:$0xff]
        %v678 = vld [vmem:[%s2 + $0x10] sm:$0xff]
        %v679 = vld [vmem:[%s2 + $0x18] sm:$0xff]
        %v680 = vld [vmem:[%s2 + $0x20] sm:$0xff]
        %v681 = vld [vmem:[%s2 + $0x28] sm:$0xff]
        %v682 = vld [vmem:[%s2 + $0x30] sm:$0xff]
        %v683 = vld [vmem:[%s2 + $0x38] sm:$0xff]
        %v684 = vld [vmem:[%s2 + $0x40] sm:$0xff]
        %v685 = vld [vmem:[%s2 + $0x48] sm:$0xff]
        %v686 = vld [vmem:[%s2 + $0x50] sm:$0xff]
        %v687 = vld [vmem:[%s2 + $0x58] sm:$0xff]
        %v688 = vld [vmem:[%s2 + $0x60] sm:$0xff]
        %v689 = vld [vmem:[%s2 + $0x68] sm:$0xff]
        %v690 = vld [vmem:[%s2 + $0x70] sm:$0xff]
        %v691 = vld [vmem:[%s2 + $0x78] sm:$0xff]
        %v692 = vld [vmem:[%s2 + $0x80] sm:$0xff]
        %v693 = vld [vmem:[%s2 + $0x88] sm:$0xff]
        %v694 = vld [vmem:[%s2 + $0x90] sm:$0xff]
        %v695 = vld [vmem:[%s2 + $0x98] sm:$0xff]
        %v696 = vld [vmem:[%s2 + $0xa0] sm:$0xff]
        %v697 = vld [vmem:[%s2 + $0xa8] sm:$0xff]
        %v698 = vld [vmem:[%s2 + $0xb0] sm:$0xff]
        %v699 = vld [vmem:[%s2 + $0xb8] sm:$0xff]
        %v700 = vld [vmem:[%s2 + $0xc0] sm:$0xff]
        %v701 = vld [vmem:[%s2 + $0xc8] sm:$0xff]
        %v702 = vld [vmem:[%s2 + $0xd0] sm:$0xff]
        %v703 = vld [vmem:[%s2 + $0xd8] sm:$0xff]
        %v704 = vld [vmem:[%s2 + $0xe0] sm:$0xff]
        %v705 = vld [vmem:[%s2 + $0xe8] sm:$0xff]
        %v706 = vld [vmem:[%s2 + $0xf0] sm:$0xff]
        %v707 = vld [vmem:[%s2 + $0xf8] sm:$0xff]
        %v708 = vld [vmem:[%s2 + $0x100] sm:$0xff]
        %v709 = vld [vmem:[%s2 + $0x108] sm:$0xff]
        %v710 = vld [vmem:[%s2 + $0x110] sm:$0xff]
        %v711 = vld [vmem:[%s2 + $0x118] sm:$0xff]
        %v712 = vld [vmem:[%s2 + $0x120] sm:$0xff]
        %v713 = vld [vmem:[%s2 + $0x128] sm:$0xff]
        %v714 = vld [vmem:[%s2 + $0x130] sm:$0xff]
        %v715 = vld [vmem:[%s2 + $0x138] sm:$0xff]
        %v716 = vld [vmem:[%s2 + $0x140] sm:$0xff]
        %v717 = vld [vmem:[%s2 + $0x148] sm:$0xff]
        %v718 = vld [vmem:[%s2 + $0x150] sm:$0xff]
        %v719 = vld [vmem:[%s2 + $0x158] sm:$0xff]
        %v720 = vld [vmem:[%s2 + $0x160] sm:$0xff]
        %v721 = vld [vmem:[%s2 + $0x168] sm:$0xff]
        %v722 = vld [vmem:[%s2 + $0x170] sm:$0xff]
        %v723 = vld [vmem:[%s2 + $0x178] sm:$0xff]
        %v724 = vld [vmem:[%s2 + $0x180] sm:$0xff]
        %v725 = vld [vmem:[%s2 + $0x188] sm:$0xff]
        %v726 = vld [vmem:[%s2 + $0x190] sm:$0xff]
        %v727 = vld [vmem:[%s2 + $0x198] sm:$0xff]
        %v728 = vld [vmem:[%s2 + $0x1a0] sm:$0xff]
        %v729 = vld [vmem:[%s2 + $0x1a8] sm:$0xff]
        %v730 = vld [vmem:[%s2 + $0x1b0] sm:$0xff]
        %v731 = vld [vmem:[%s2 + $0x1b8] sm:$0xff]
        %v732 = vld [vmem:[%s2 + $0x1c0] sm:$0xff]
        %v733 = vld [vmem:[%s2 + $0x1c8] sm:$0xff]
        %v734 = vld [vmem:[%s2 + $0x1d0] sm:$0xff]
        %v735 = vld [vmem:[%s2 + $0x1d8] sm:$0xff]
        %v736 = vld [vmem:[%s2 + $0x1e0] sm:$0xff]
        %v737 = vld [vmem:[%s2 + $0x1e8] sm:$0xff]
        %v738 = vld [vmem:[%s2 + $0x1f0] sm:$0xff]
        %v739 = vld [vmem:[%s2 + $0x1f8] sm:$0xff]
        %v740 = vld [vmem:[%s2 + $0x200] sm:$0xff]
        %v741 = vld [vmem:[%s2 + $0x208] sm:$0xff]
        %v742 = vld [vmem:[%s2 + $0x210] sm:$0xff]
        %v743 = vld [vmem:[%s2 + $0x218] sm:$0xff]
        %v744 = vld [vmem:[%s2 + $0x220] sm:$0xff]
        %v745 = vld [vmem:[%s2 + $0x228] sm:$0xff]
        %v746 = vld [vmem:[%s2 + $0x230] sm:$0xff]
        %v747 = vld [vmem:[%s2 + $0x238] sm:$0xff]
        %v748 = vld [vmem:[%s2 + $0x240] sm:$0xff]
        %v749 = vld [vmem:[%s2 + $0x248] sm:$0xff]
        %v750 = vld [vmem:[%s2 + $0x250] sm:$0xff]
        %v751 = vld [vmem:[%s2 + $0x258] sm:$0xff]
        %v752 = vld [vmem:[%s2 + $0x260] sm:$0xff]
        %v753 = vld [vmem:[%s2 + $0x268] sm:$0xff]
        %v754 = vld [vmem:[%s2 + $0x270] sm:$0xff]
        %v755 = vld [vmem:[%s2 + $0x278] sm:$0xff]
        %v756 = vld [vmem:[%s2 + $0x280] sm:$0xff]
        %v757 = vld [vmem:[%s2 + $0x288] sm:$0xff]
        %v758 = vld [vmem:[%s2 + $0x290] sm:$0xff]
        %v759 = vld [vmem:[%s2 + $0x298] sm:$0xff]
        %v760 = vld [vmem:[%s2 + $0x2a0] sm:$0xff]
        %v761 = vld [vmem:[%s2 + $0x2a8] sm:$0xff]
        %v762 = vld [vmem:[%s2 + $0x2b0] sm:$0xff]
        %v763 = vld [vmem:[%s2 + $0x2b8] sm:$0xff]
        %v764 = vld [vmem:[%s2 + $0x2c0] sm:$0xff]
        %v765 = vld [vmem:[%s2 + $0x2c8] sm:$0xff]
        %v766 = vld [vmem:[%s2 + $0x2d0] sm:$0xff]
        %v767 = vld [vmem:[%s2 + $0x2d8] sm:$0xff]
        %v768 = vld [vmem:[%s2 + $0x2e0] sm:$0xff]
        %v769 = vld [vmem:[%s2 + $0x2e8] sm:$0xff]
        %v770 = vld [vmem:[%s2 + $0x2f0] sm:$0xff]
        %v771 = vld [vmem:[%s2 + $0x2f8] sm:$0xff]
        %v772 = vld [vmem:[%s2 + $0x300] sm:$0xff]
        %v773 = vld [vmem:[%s2 + $0x308] sm:$0xff]
        %v774 = vld [vmem:[%s2 + $0x310] sm:$0xff]
        %v775 = vld [vmem:[%s2 + $0x318] sm:$0xff]
        %v776 = vld [vmem:[%s2 + $0x320] sm:$0xff]
        %v777 = vld [vmem:[%s2 + $0x328] sm:$0xff]
        %v778 = vld [vmem:[%s2 + $0x330] sm:$0xff]
        %v779 = vld [vmem:[%s2 + $0x338] sm:$0xff]
        %v780 = vld [vmem:[%s2 + $0x340] sm:$0xff]
        %v781 = vld [vmem:[%s2 + $0x348] sm:$0xff]
        %v782 = vld [vmem:[%s2 + $0x350] sm:$0xff]
        %v783 = vld [vmem:[%s2 + $0x358] sm:$0xff]
        %v784 = vld [vmem:[%s2 + $0x360] sm:$0xff]
        %v785 = vld [vmem:[%s2 + $0x368] sm:$0xff]
        %v786 = vld [vmem:[%s2 + $0x370] sm:$0xff]
        %v787 = vld [vmem:[%s2 + $0x378] sm:$0xff]
        %v788 = vld [vmem:[%s2 + $0x380] sm:$0xff]
        %v789 = vld [vmem:[%s2 + $0x388] sm:$0xff]
        %v790 = vld [vmem:[%s2 + $0x390] sm:$0xff]
        %v791 = vld [vmem:[%s2 + $0x398] sm:$0xff]
        %v792 = vld [vmem:[%s2 + $0x3a0] sm:$0xff]
        %v793 = vld [vmem:[%s2 + $0x3a8] sm:$0xff]
        %v794 = vld [vmem:[%s2 + $0x3b0] sm:$0xff]
        %v795 = vld [vmem:[%s2 + $0x3b8] sm:$0xff]
        %v796 = vld [vmem:[%s2 + $0x3c0] sm:$0xff]
        %v797 = vld [vmem:[%s2 + $0x3c8] sm:$0xff]
        %v798 = vld [vmem:[%s2 + $0x3d0] sm:$0xff]
        %v799 = vld [vmem:[%s2 + $0x3d8] sm:$0xff]
        %v800 = vld [vmem:[%s2 + $0x3e0] sm:$0xff]
        %v801 = vld [vmem:[%s2 + $0x3e8] sm:$0xff]
        %v802 = vld [vmem:[%s2 + $0x3f0] sm:$0xff]
        %v803 = vld [vmem:[%s2 + $0x3f8] sm:$0xff]
        %v804 = vld [vmem:[%s2 + $0x400] sm:$0xff]
        %v805 = vld [vmem:[%s2 + $0x408] sm:$0xff]
        %v806 = vld [vmem:[%s2 + $0x410] sm:$0xff]
        %v807 = vld [vmem:[%s2 + $0x418] sm:$0xff]
        %v808 = vld [vmem:[%s2 + $0x420] sm:$0xff]
        %v809 = vld [vmem:[%s2 + $0x428] sm:$0xff]
        %v810 = vld [vmem:[%s2 + $0x430] sm:$0xff]
        %v811 = vld [vmem:[%s2 + $0x438] sm:$0xff]
        %v812 = vld [vmem:[%s2 + $0x440] sm:$0xff]
        %v813 = vld [vmem:[%s2 + $0x448] sm:$0xff]
        %v814 = vld [vmem:[%s2 + $0x450] sm:$0xff]
        %v815 = vld [vmem:[%s2 + $0x458] sm:$0xff]
        %v816 = vld [vmem:[%s2 + $0x460] sm:$0xff]
        %v817 = vld [vmem:[%s2 + $0x468] sm:$0xff]
        %v818 = vld [vmem:[%s2 + $0x470] sm:$0xff]
        %v819 = vld [vmem:[%s2 + $0x478] sm:$0xff]
        %v820 = vld [vmem:[%s2 + $0x480] sm:$0xff]
        %v821 = vld [vmem:[%s2 + $0x488] sm:$0xff]
        %v822 = vld [vmem:[%s2 + $0x490] sm:$0xff]
        %v823 = vld [vmem:[%s2 + $0x498] sm:$0xff]
        %v824 = vld [vmem:[%s2 + $0x4a0] sm:$0xff]
        %v825 = vld [vmem:[%s2 + $0x4a8] sm:$0xff]
        %v826 = vld [vmem:[%s2 + $0x4b0] sm:$0xff]
        %v827 = vld [vmem:[%s2 + $0x4b8] sm:$0xff]
        %v828 = vld [vmem:[%s2 + $0x4c0] sm:$0xff]
        %v829 = vld [vmem:[%s2 + $0x4c8] sm:$0xff]
        %v830 = vld [vmem:[%s2 + $0x4d0] sm:$0xff]
        %v831 = vld [vmem:[%s2 + $0x4d8] sm:$0xff]
        %v832 = vld [vmem:[%s2 + $0x4e0] sm:$0xff]
        %v833 = vld [vmem:[%s2 + $0x4e8] sm:$0xff]
        %v834 = vld [vmem:[%s2 + $0x4f0] sm:$0xff]
        %v835 = vld [vmem:[%s2 + $0x4f8] sm:$0xff]
        %s836 = scalar_lea.vmem %s4, 3
        %v837 = vld [vmem:[%s836] ss:$8 sm:$0xf]
        %v838 = vld [vmem:[%s836] ss:$8 sm:$0x10]
        %v839 = vor.u32 %v837, %v838
        %v841 = vlaneseq
        %v842 = vshrl.u32 %v841, 7
        %v843 = vsub.s32 0, %v842
        %v844 = vrot.slane %v839, %v843
        %v845 = vlaneseq
        %v846 = vshrl.u32 %v845, 7
        %v847 = vsub.s32 1, %v846
        %v848 = vrot.slane %v839, %v847
        %v849 = vlaneseq
        %v850 = vshrl.u32 %v849, 7
        %v851 = vsub.s32 2, %v850
        %v852 = vrot.slane %v839, %v851
        %v853 = vlaneseq
        %v854 = vshrl.u32 %v853, 7
        %v855 = vsub.s32 3, %v854
        %v856 = vrot.slane %v839, %v855
        %v857 = vlaneseq
        %v858 = vshrl.u32 %v857, 7
        %v859 = vsub.s32 4, %v858
        %v860 = vrot.slane %v839, %v859
        %866 = vmatprep.subr.mxu0 %v752
        %867 = vmatpush1.msra.mxu0 %v751
        %868 = vmatprep.subr.mxu0 %v747
        %869 = vmatpush1.msra.mxu0 %v746
        %870 = vmatprep.subr.mxu0 %v742
        %871 = vmatpush1.msra.mxu0 %v741
        %872 = vmatprep.subr.mxu0 %v737
        %873 = vmatpush1.msra.mxu0 %v736
        %874 = vmatprep.subr.mxu0 %v732
        %875 = vmatpush1.msra.mxu0 %v731
        %876 = vmatprep.subr.mxu0 %v727
        %877 = vmatpush1.msra.mxu0 %v726
        %878 = vmatprep.subr.mxu0 %v722
        %879 = vmatpush1.msra.mxu0 %v721
        %880 = vmatprep.subr.mxu0 %v717
        %881 = vmatpush1.msra.mxu0 %v716
        %882 = vmatprep.subr.mxu0 %v712
        %883 = vmatpush1.msra.mxu0 %v711
        %884 = vmatprep.subr.mxu0 %v707
        %885 = vmatpush1.msra.mxu0 %v706
        %886 = vmatprep.subr.mxu0 %v702
        %887 = vmatpush1.msra.mxu0 %v701
        %888 = vmatprep.subr.mxu0 %v697
        %889 = vmatpush1.msra.mxu0 %v696
        %890 = vmatprep.subr.mxu0 %v692
        %891 = vmatpush1.msra.mxu0 %v691
        %892 = vmatprep.subr.mxu0 %v687
        %893 = vmatpush1.msra.mxu0 %v686
        %894 = vmatprep.subr.mxu0 %v682
        %895 = vmatpush1.msra.mxu0 %v681
        %896 = vmatprep.subr.mxu0 %v677
        %897 = vmatpush1.msra.mxu0 %v676
        %898 = vmatprep.subr.mxu0 %v832
        %899 = vmatpush2.msra.mxu0 %v831
        %900 = vmatprep.subr.mxu0 %v827
        %901 = vmatpush2.msra.mxu0 %v826
        %902 = vmatprep.subr.mxu0 %v822
        %903 = vmatpush2.msra.mxu0 %v821
        %904 = vmatprep.subr.mxu0 %v817
        %905 = vmatpush2.msra.mxu0 %v816
        %906 = vmatprep.subr.mxu0 %v812
        %907 = vmatpush2.msra.mxu0 %v811
        %908 = vmatprep.subr.mxu0 %v807
        %909 = vmatpush2.msra.mxu0 %v806
        %910 = vmatprep.subr.mxu0 %v802
        %911 = vmatpush2.msra.mxu0 %v801
        %912 = vmatprep.subr.mxu0 %v797
        %913 = vmatpush2.msra.mxu0 %v796
        %914 = vmatprep.subr.mxu0 %v792
        %915 = vmatpush2.msra.mxu0 %v791
        %916 = vmatprep.subr.mxu0 %v787
        %917 = vmatpush2.msra.mxu0 %v786
        %918 = vmatprep.subr.mxu0 %v782
        %919 = vmatpush2.msra.mxu0 %v781
        %920 = vmatprep.subr.mxu0 %v777
        %921 = vmatpush2.msra.mxu0 %v776
        %922 = vmatprep.subr.mxu0 %v772
        %923 = vmatpush2.msra.mxu0 %v771
        %924 = vmatprep.subr.mxu0 %v767
        %925 = vmatpush2.msra.mxu0 %v766
        %926 = vmatprep.subr.mxu0 %v762
        %927 = vmatpush2.msra.mxu0 %v761
        %928 = vmatprep.subr.mxu0 %v757
        %929 = vmatpush2.msra.mxu0 %v756
        %930 = vmatprep.mubr.f32.mxu0 %v675
        %931 = vmatmul.mubr.f32.gmra.mxu0 %v674
        %v932 = vpop.f32.mrf.mxu0
        %v933 = vadd.f32 %v844, %v932
        %v934 = vpop.f32.mrf.mxu0
        %v935 = vadd.f32 %v848, %v934
        %936 = vdwg.mxu0
        %937 = vmatprep.subr.mxu0 %v754
        %938 = vmatpush1.msra.mxu0 %v753
        %939 = vmatprep.subr.mxu0 %v749
        %940 = vmatpush1.msra.mxu0 %v748
        %941 = vmatprep.subr.mxu0 %v744
        %942 = vmatpush1.msra.mxu0 %v743
        %943 = vmatprep.subr.mxu0 %v739
        %944 = vmatpush1.msra.mxu0 %v738
        %945 = vmatprep.subr.mxu0 %v734
        %946 = vmatpush1.msra.mxu0 %v733
        %947 = vmatprep.subr.mxu0 %v729
        %948 = vmatpush1.msra.mxu0 %v728
        %949 = vmatprep.subr.mxu0 %v724
        %950 = vmatpush1.msra.mxu0 %v723
        %951 = vmatprep.subr.mxu0 %v719
        %952 = vmatpush1.msra.mxu0 %v718
        %953 = vmatprep.subr.mxu0 %v714
        %954 = vmatpush1.msra.mxu0 %v713
        %955 = vmatprep.subr.mxu0 %v709
        %956 = vmatpush1.msra.mxu0 %v708
        %957 = vmatprep.subr.mxu0 %v704
        %958 = vmatpush1.msra.mxu0 %v703
        %959 = vmatprep.subr.mxu0 %v699
        %960 = vmatpush1.msra.mxu0 %v698
        %961 = vmatprep.subr.mxu0 %v694
        %962 = vmatpush1.msra.mxu0 %v693
        %963 = vmatprep.subr.mxu0 %v689
        %964 = vmatpush1.msra.mxu0 %v688
        %965 = vmatprep.subr.mxu0 %v684
        %966 = vmatpush1.msra.mxu0 %v683
        %967 = vmatprep.subr.mxu0 %v679
        %968 = vmatpush1.msra.mxu0 %v678
        %969 = vmatprep.subr.mxu0 %v834
        %970 = vmatpush2.msra.mxu0 %v833
        %971 = vmatprep.subr.mxu0 %v829
        %972 = vmatpush2.msra.mxu0 %v828
        %973 = vmatprep.subr.mxu0 %v824
        %974 = vmatpush2.msra.mxu0 %v823
        %975 = vmatprep.subr.mxu0 %v819
        %976 = vmatpush2.msra.mxu0 %v818
        %977 = vmatprep.subr.mxu0 %v814
        %978 = vmatpush2.msra.mxu0 %v813
        %979 = vmatprep.subr.mxu0 %v809
        %980 = vmatpush2.msra.mxu0 %v808
        %981 = vmatprep.subr.mxu0 %v804
        %982 = vmatpush2.msra.mxu0 %v803
        %983 = vmatprep.subr.mxu0 %v799
        %984 = vmatpush2.msra.mxu0 %v798
        %985 = vmatprep.subr.mxu0 %v794
        %986 = vmatpush2.msra.mxu0 %v793
        %987 = vmatprep.subr.mxu0 %v789
        %988 = vmatpush2.msra.mxu0 %v788
        %989 = vmatprep.subr.mxu0 %v784
        %990 = vmatpush2.msra.mxu0 %v783
        %991 = vmatprep.subr.mxu0 %v779
        %992 = vmatpush2.msra.mxu0 %v778
        %993 = vmatprep.subr.mxu0 %v774
        %994 = vmatpush2.msra.mxu0 %v773
        %995 = vmatprep.subr.mxu0 %v769
        %996 = vmatpush2.msra.mxu0 %v768
        %997 = vmatprep.subr.mxu0 %v764
        %998 = vmatpush2.msra.mxu0 %v763
        %999 = vmatprep.subr.mxu0 %v759
        %1000 = vmatpush2.msra.mxu0 %v758
        %1001 = vmatprep.mubr.f32.mxu0 %v675
        %1002 = vmatmul.mubr.f32.gmra.mxu0 %v674
        %v1003 = vpop.f32.mrf.mxu0
        %v1004 = vadd.f32 %v852, %v1003
        %v1005 = vpop.f32.mrf.mxu0
        %v1006 = vadd.f32 %v856, %v1005
        %1007 = vdwg.mxu0
        %1008 = vmatprep.subr.mxu0 0.0
        %1009 = vmatpush1.msra.mxu0 %v755
        %1010 = vmatprep.subr.mxu0 0.0
        %1011 = vmatpush1.msra.mxu0 %v750
        %1012 = vmatprep.subr.mxu0 0.0
        %1013 = vmatpush1.msra.mxu0 %v745
        %1014 = vmatprep.subr.mxu0 0.0
        %1015 = vmatpush1.msra.mxu0 %v740
        %1016 = vmatprep.subr.mxu0 0.0
        %1017 = vmatpush1.msra.mxu0 %v735
        %1018 = vmatprep.subr.mxu0 0.0
        %1019 = vmatpush1.msra.mxu0 %v730
        %1020 = vmatprep.subr.mxu0 0.0
        %1021 = vmatpush1.msra.mxu0 %v725
        %1022 = vmatprep.subr.mxu0 0.0
        %1023 = vmatpush1.msra.mxu0 %v720
        %1024 = vmatprep.subr.mxu0 0.0
        %1025 = vmatpush1.msra.mxu0 %v715
        %1026 = vmatprep.subr.mxu0 0.0
        %1027 = vmatpush1.msra.mxu0 %v710
        %1028 = vmatprep.subr.mxu0 0.0
        %1029 = vmatpush1.msra.mxu0 %v705
        %1030 = vmatprep.subr.mxu0 0.0
        %1031 = vmatpush1.msra.mxu0 %v700
        %1032 = vmatprep.subr.mxu0 0.0
        %1033 = vmatpush1.msra.mxu0 %v695
        %1034 = vmatprep.subr.mxu0 0.0
        %1035 = vmatpush1.msra.mxu0 %v690
        %1036 = vmatprep.subr.mxu0 0.0
        %1037 = vmatpush1.msra.mxu0 %v685
        %1038 = vmatprep.subr.mxu0 0.0
        %1039 = vmatpush1.msra.mxu0 %v680
        %1040 = vmatprep.subr.mxu0 0.0
        %1041 = vmatpush2.msra.mxu0 %v835
        %1042 = vmatprep.subr.mxu0 0.0
        %1043 = vmatpush2.msra.mxu0 %v830
        %1044 = vmatprep.subr.mxu0 0.0
        %1045 = vmatpush2.msra.mxu0 %v825
        %1046 = vmatprep.subr.mxu0 0.0
        %1047 = vmatpush2.msra.mxu0 %v820
        %1048 = vmatprep.subr.mxu0 0.0
        %1049 = vmatpush2.msra.mxu0 %v815
        %1050 = vmatprep.subr.mxu0 0.0
        %1051 = vmatpush2.msra.mxu0 %v810
        %1052 = vmatprep.subr.mxu0 0.0
        %1053 = vmatpush2.msra.mxu0 %v805
        %1054 = vmatprep.subr.mxu0 0.0
        %1055 = vmatpush2.msra.mxu0 %v800
        %1056 = vmatprep.subr.mxu0 0.0
        %1057 = vmatpush2.msra.mxu0 %v795
        %1058 = vmatprep.subr.mxu0 0.0
        %1059 = vmatpush2.msra.mxu0 %v790
        %1060 = vmatprep.subr.mxu0 0.0
        %1061 = vmatpush2.msra.mxu0 %v785
        %1062 = vmatprep.subr.mxu0 0.0
        %1063 = vmatpush2.msra.mxu0 %v780
        %1064 = vmatprep.subr.mxu0 0.0
        %1065 = vmatpush2.msra.mxu0 %v775
        %1066 = vmatprep.subr.mxu0 0.0
        %1067 = vmatpush2.msra.mxu0 %v770
        %1068 = vmatprep.subr.mxu0 0.0
        %1069 = vmatpush2.msra.mxu0 %v765
        %1070 = vmatprep.subr.mxu0 0.0
        %1071 = vmatpush2.msra.mxu0 %v760
        %1072 = vmatprep.mubr.f32.mxu0 %v675
        %1073 = vmatmul.mubr.f32.gmra.mxu0 %v674
        %v1074 = vpop.f32.mrf.mxu0
        %v1075 = vadd.f32 %v860, %v1074
        %v1076 = vpop.f32.mrf.mxu0
        %1077 = vdwg.mxu0
        %v1078 = vmax.f32 %v933, 0.0
        %v1079 = vmax.f32 %v935, 0.0
        %v1080 = vmax.f32 %v1004, 0.0
        %v1081 = vmax.f32 %v1006, 0.0
        %v1082 = vmax.f32 %v1075, 0.0
        %v1083 = vld [vmem:[%s3] sm:$0xff]
        %v1084 = vld [vmem:[%s3 + $0x8] sm:$0xff]
        %v1085 = vld [vmem:[%s3 + $0x10] sm:$0xff]
        %v1086 = vld [vmem:[%s3 + $0x18] sm:$0xff]
        %v1087 = vld [vmem:[%s3 + $0x20] sm:$0xff]
        %v1088 = vld [vmem:[%s3 + $0x28] sm:$0xff]
        %v1089 = vld [vmem:[%s3 + $0x30] sm:$0xff]
        %v1090 = vld [vmem:[%s3 + $0x38] sm:$0xff]
        %v1091 = vld [vmem:[%s3 + $0x40] sm:$0xff]
        %v1092 = vld [vmem:[%s3 + $0x48] sm:$0xff]
        %v1093 = vld [vmem:[%s3 + $0x50] sm:$0xff]
        %v1094 = vld [vmem:[%s3 + $0x58] sm:$0xff]
        %v1095 = vld [vmem:[%s3 + $0x60] sm:$0xff]
        %v1096 = vld [vmem:[%s3 + $0x68] sm:$0xff]
        %v1097 = vld [vmem:[%s3 + $0x70] sm:$0xff]
        %v1098 = vld [vmem:[%s3 + $0x78] sm:$0xff]
        %v1099 = vld [vmem:[%s3 + $0x80] sm:$0xff]
        %v1100 = vld [vmem:[%s3 + $0x88] sm:$0xff]
        %v1101 = vld [vmem:[%s3 + $0x90] sm:$0xff]
        %v1102 = vld [vmem:[%s3 + $0x98] sm:$0xff]
        %v1103 = vld [vmem:[%s3 + $0xa0] sm:$0xff]
        %v1104 = vld [vmem:[%s3 + $0xa8] sm:$0xff]
        %v1105 = vld [vmem:[%s3 + $0xb0] sm:$0xff]
        %v1106 = vld [vmem:[%s3 + $0xb8] sm:$0xff]
        %v1107 = vld [vmem:[%s3 + $0xc0] sm:$0xff]
        %v1108 = vld [vmem:[%s3 + $0xc8] sm:$0xff]
        %v1109 = vld [vmem:[%s3 + $0xd0] sm:$0xff]
        %v1110 = vld [vmem:[%s3 + $0xd8] sm:$0xff]
        %v1111 = vld [vmem:[%s3 + $0xe0] sm:$0xff]
        %v1112 = vld [vmem:[%s3 + $0xe8] sm:$0xff]
        %v1113 = vld [vmem:[%s3 + $0xf0] sm:$0xff]
        %v1114 = vld [vmem:[%s3 + $0xf8] sm:$0xff]
        %v1115 = vld [vmem:[%s3 + $0x100] sm:$0xff]
        %v1116 = vld [vmem:[%s3 + $0x108] sm:$0xff]
        %v1117 = vld [vmem:[%s3 + $0x110] sm:$0xff]
        %v1118 = vld [vmem:[%s3 + $0x118] sm:$0xff]
        %v1119 = vld [vmem:[%s3 + $0x120] sm:$0xff]
        %v1120 = vld [vmem:[%s3 + $0x128] sm:$0xff]
        %v1121 = vld [vmem:[%s3 + $0x130] sm:$0xff]
        %v1122 = vld [vmem:[%s3 + $0x138] sm:$0xff]
        %v1123 = vld [vmem:[%s3 + $0x140] sm:$0xff]
        %v1124 = vld [vmem:[%s3 + $0x148] sm:$0xff]
        %v1125 = vld [vmem:[%s3 + $0x150] sm:$0xff]
        %v1126 = vld [vmem:[%s3 + $0x158] sm:$0xff]
        %v1127 = vld [vmem:[%s3 + $0x160] sm:$0xff]
        %v1128 = vld [vmem:[%s3 + $0x168] sm:$0xff]
        %v1129 = vld [vmem:[%s3 + $0x170] sm:$0xff]
        %v1130 = vld [vmem:[%s3 + $0x178] sm:$0xff]
        %v1131 = vld [vmem:[%s3 + $0x180] sm:$0xff]
        %v1132 = vld [vmem:[%s3 + $0x188] sm:$0xff]
        %v1133 = vld [vmem:[%s3 + $0x190] sm:$0xff]
        %v1134 = vld [vmem:[%s3 + $0x198] sm:$0xff]
        %v1135 = vld [vmem:[%s3 + $0x1a0] sm:$0xff]
        %v1136 = vld [vmem:[%s3 + $0x1a8] sm:$0xff]
        %v1137 = vld [vmem:[%s3 + $0x1b0] sm:$0xff]
        %v1138 = vld [vmem:[%s3 + $0x1b8] sm:$0xff]
        %v1139 = vld [vmem:[%s3 + $0x1c0] sm:$0xff]
        %v1140 = vld [vmem:[%s3 + $0x1c8] sm:$0xff]
        %v1141 = vld [vmem:[%s3 + $0x1d0] sm:$0xff]
        %v1142 = vld [vmem:[%s3 + $0x1d8] sm:$0xff]
        %v1143 = vld [vmem:[%s3 + $0x1e0] sm:$0xff]
        %v1144 = vld [vmem:[%s3 + $0x1e8] sm:$0xff]
        %v1145 = vld [vmem:[%s3 + $0x1f0] sm:$0xff]
        %v1146 = vld [vmem:[%s3 + $0x1f8] sm:$0xff]
        %v1147 = vld [vmem:[%s3 + $0x200] sm:$0xff]
        %v1148 = vld [vmem:[%s3 + $0x208] sm:$0xff]
        %v1149 = vld [vmem:[%s3 + $0x210] sm:$0xff]
        %v1150 = vld [vmem:[%s3 + $0x218] sm:$0xff]
        %v1151 = vld [vmem:[%s3 + $0x220] sm:$0xff]
        %v1152 = vld [vmem:[%s3 + $0x228] sm:$0xff]
        %v1153 = vld [vmem:[%s3 + $0x230] sm:$0xff]
        %v1154 = vld [vmem:[%s3 + $0x238] sm:$0xff]
        %v1155 = vld [vmem:[%s4 + $0x4] ss:$0 sm:$0xff]
        %vm1156 = vcmask 523264
        %v1158 = vsel %vm1156, %v1082, 0
        %1160 = vmatprep.subr.mxu0 0.0
        %1161 = vmatpush1.msra.mxu0 %v1098
        %1162 = vmatprep.subr.mxu0 0.0
        %1163 = vmatpush1.msra.mxu0 %v1097
        %1164 = vmatprep.subr.mxu0 0.0
        %1165 = vmatpush1.msra.mxu0 %v1096
        %1166 = vmatprep.subr.mxu0 0.0
        %1167 = vmatpush1.msra.mxu0 %v1095
        %1168 = vmatprep.subr.mxu0 0.0
        %1169 = vmatpush1.msra.mxu0 %v1094
        %1170 = vmatprep.subr.mxu0 0.0
        %1171 = vmatpush1.msra.mxu0 %v1093
        %1172 = vmatprep.subr.mxu0 0.0
        %1173 = vmatpush1.msra.mxu0 %v1092
        %1174 = vmatprep.subr.mxu0 0.0
        %1175 = vmatpush1.msra.mxu0 %v1091
        %1176 = vmatprep.subr.mxu0 0.0
        %1177 = vmatpush1.msra.mxu0 %v1090
        %1178 = vmatprep.subr.mxu0 0.0
        %1179 = vmatpush1.msra.mxu0 %v1089
        %1180 = vmatprep.subr.mxu0 0.0
        %1181 = vmatpush1.msra.mxu0 %v1088
        %1182 = vmatprep.subr.mxu0 0.0
        %1183 = vmatpush1.msra.mxu0 %v1087
        %1184 = vmatprep.subr.mxu0 0.0
        %1185 = vmatpush1.msra.mxu0 %v1086
        %1186 = vmatprep.subr.mxu0 0.0
        %1187 = vmatpush1.msra.mxu0 %v1085
        %1188 = vmatprep.subr.mxu0 0.0
        %1189 = vmatpush1.msra.mxu0 %v1084
        %1190 = vmatprep.subr.mxu0 0.0
        %1191 = vmatpush1.msra.mxu0 %v1083
        %1192 = vmatprep.subr.mxu0 0.0
        %1193 = vmatpush2.msra.mxu0 %v1114
        %1194 = vmatprep.subr.mxu0 0.0
        %1195 = vmatpush2.msra.mxu0 %v1113
        %1196 = vmatprep.subr.mxu0 0.0
        %1197 = vmatpush2.msra.mxu0 %v1112
        %1198 = vmatprep.subr.mxu0 0.0
        %1199 = vmatpush2.msra.mxu0 %v1111
        %1200 = vmatprep.subr.mxu0 0.0
        %1201 = vmatpush2.msra.mxu0 %v1110
        %1202 = vmatprep.subr.mxu0 0.0
        %1203 = vmatpush2.msra.mxu0 %v1109
        %1204 = vmatprep.subr.mxu0 0.0
        %1205 = vmatpush2.msra.mxu0 %v1108
        %1206 = vmatprep.subr.mxu0 0.0
        %1207 = vmatpush2.msra.mxu0 %v1107
        %1208 = vmatprep.subr.mxu0 0.0
        %1209 = vmatpush2.msra.mxu0 %v1106
        %1210 = vmatprep.subr.mxu0 0.0
        %1211 = vmatpush2.msra.mxu0 %v1105
        %1212 = vmatprep.subr.mxu0 0.0
        %1213 = vmatpush2.msra.mxu0 %v1104
        %1214 = vmatprep.subr.mxu0 0.0
        %1215 = vmatpush2.msra.mxu0 %v1103
        %1216 = vmatprep.subr.mxu0 0.0
        %1217 = vmatpush2.msra.mxu0 %v1102
        %1218 = vmatprep.subr.mxu0 0.0
        %1219 = vmatpush2.msra.mxu0 %v1101
        %1220 = vmatprep.subr.mxu0 0.0
        %1221 = vmatpush2.msra.mxu0 %v1100
        %1222 = vmatprep.subr.mxu0 0.0
        %1223 = vmatpush2.msra.mxu0 %v1099
        %1224 = vmatprep.mubr.f32.mxu0 %v1079
        %1225 = vmatmul.mubr.f32.gmra.mxu0 %v1078
        %v1226 = vpop.f32.mrf.mxu0
        %v1227 = vadd.f32 %v1155, %v1226
        %v1228 = vpop.f32.mrf.mxu0
        %1229 = vdwg.mxu0
        %1230 = vmatprep.subr.mxu0 0.0
        %1231 = vmatpush1.msra.mxu0 %v1130
        %1232 = vmatprep.subr.mxu0 0.0
        %1233 = vmatpush1.msra.mxu0 %v1129
        %1234 = vmatprep.subr.mxu0 0.0
        %1235 = vmatpush1.msra.mxu0 %v1128
        %1236 = vmatprep.subr.mxu0 0.0
        %1237 = vmatpush1.msra.mxu0 %v1127
        %1238 = vmatprep.subr.mxu0 0.0
        %1239 = vmatpush1.msra.mxu0 %v1126
        %1240 = vmatprep.subr.mxu0 0.0
        %1241 = vmatpush1.msra.mxu0 %v1125
        %1242 = vmatprep.subr.mxu0 0.0
        %1243 = vmatpush1.msra.mxu0 %v1124
        %1244 = vmatprep.subr.mxu0 0.0
        %1245 = vmatpush1.msra.mxu0 %v1123
        %1246 = vmatprep.subr.mxu0 0.0
        %1247 = vmatpush1.msra.mxu0 %v1122
        %1248 = vmatprep.subr.mxu0 0.0
        %1249 = vmatpush1.msra.mxu0 %v1121
        %1250 = vmatprep.subr.mxu0 0.0
        %1251 = vmatpush1.msra.mxu0 %v1120
        %1252 = vmatprep.subr.mxu0 0.0
        %1253 = vmatpush1.msra.mxu0 %v1119
        %1254 = vmatprep.subr.mxu0 0.0
        %1255 = vmatpush1.msra.mxu0 %v1118
        %1256 = vmatprep.subr.mxu0 0.0
        %1257 = vmatpush1.msra.mxu0 %v1117
        %1258 = vmatprep.subr.mxu0 0.0
        %1259 = vmatpush1.msra.mxu0 %v1116
        %1260 = vmatprep.subr.mxu0 0.0
        %1261 = vmatpush1.msra.mxu0 %v1115
        %1262 = vmatprep.subr.mxu0 0.0
        %1263 = vmatpush2.msra.mxu0 %v1146
        %1264 = vmatprep.subr.mxu0 0.0
        %1265 = vmatpush2.msra.mxu0 %v1145
        %1266 = vmatprep.subr.mxu0 0.0
        %1267 = vmatpush2.msra.mxu0 %v1144
        %1268 = vmatprep.subr.mxu0 0.0
        %1269 = vmatpush2.msra.mxu0 %v1143
        %1270 = vmatprep.subr.mxu0 0.0
        %1271 = vmatpush2.msra.mxu0 %v1142
        %1272 = vmatprep.subr.mxu0 0.0
        %1273 = vmatpush2.msra.mxu0 %v1141
        %1274 = vmatprep.subr.mxu0 0.0
        %1275 = vmatpush2.msra.mxu0 %v1140
        %1276 = vmatprep.subr.mxu0 0.0
        %1277 = vmatpush2.msra.mxu0 %v1139
        %1278 = vmatprep.subr.mxu0 0.0
        %1279 = vmatpush2.msra.mxu0 %v1138
        %1280 = vmatprep.subr.mxu0 0.0
        %1281 = vmatpush2.msra.mxu0 %v1137
        %1282 = vmatprep.subr.mxu0 0.0
        %1283 = vmatpush2.msra.mxu0 %v1136
        %1284 = vmatprep.subr.mxu0 0.0
        %1285 = vmatpush2.msra.mxu0 %v1135
        %1286 = vmatprep.subr.mxu0 0.0
        %1287 = vmatpush2.msra.mxu0 %v1134
        %1288 = vmatprep.subr.mxu0 0.0
        %1289 = vmatpush2.msra.mxu0 %v1133
        %1290 = vmatprep.subr.mxu0 0.0
        %1291 = vmatpush2.msra.mxu0 %v1132
        %1292 = vmatprep.subr.mxu0 0.0
        %1293 = vmatpush2.msra.mxu0 %v1131
        %1294 = vmatprep.mubr.f32.mxu0 %v1081
        %1295 = vmatmul.mubr.f32.gmra.mxu0 %v1080
        %v1296 = vpop.f32.mrf.mxu0
        %v1297 = vadd.f32 %v1227, %v1296
        %v1298 = vpop.f32.mrf.mxu0
        %1299 = vdwg.mxu0
        %1300 = vmatprep.subr.mxu0 0.0
        %1301 = vmatpush1.msra.mxu0 0.0
        %1302 = vmatprep.subr.mxu0 0.0
        %1303 = vmatpush1.msra.mxu0 0.0
        %1304 = vmatprep.subr.mxu0 0.0
        %1305 = vmatpush1.msra.mxu0 0.0
        %1306 = vmatprep.subr.mxu0 0.0
        %1307 = vmatpush1.msra.mxu0 0.0
        %1308 = vmatprep.subr.mxu0 0.0
        %1309 = vmatpush1.msra.mxu0 0.0
        %1310 = vmatprep.subr.mxu0 0.0
        %1311 = vmatpush1.msra.mxu0 0.0
        %1312 = vmatprep.subr.mxu0 0.0
        %1313 = vmatpush1.msra.mxu0 0.0
        %1314 = vmatprep.subr.mxu0 0.0
        %1315 = vmatpush1.msra.mxu0 0.0
        %1316 = vmatprep.subr.mxu0 0.0
        %1317 = vmatpush1.msra.mxu0 %v1154
        %1318 = vmatprep.subr.mxu0 0.0
        %1319 = vmatpush1.msra.mxu0 %v1153
        %1320 = vmatprep.subr.mxu0 0.0
        %1321 = vmatpush1.msra.mxu0 %v1152
        %1322 = vmatprep.subr.mxu0 0.0
        %1323 = vmatpush1.msra.mxu0 %v1151
        %1324 = vmatprep.subr.mxu0 0.0
        %1325 = vmatpush1.msra.mxu0 %v1150
        %1326 = vmatprep.subr.mxu0 0.0
        %1327 = vmatpush1.msra.mxu0 %v1149
        %1328 = vmatprep.subr.mxu0 0.0
        %1329 = vmatpush1.msra.mxu0 %v1148
        %1330 = vmatprep.subr.mxu0 0.0
        %1331 = vmatpush1.msra.mxu0 %v1147
        %1332 = vmatprep.subr.mxu0 0.0
        %1333 = vmatpush2.msra.mxu0 0.0
        %1334 = vmatprep.subr.mxu0 0.0
        %1335 = vmatpush2.msra.mxu0 0.0
        %1336 = vmatprep.subr.mxu0 0.0
        %1337 = vmatpush2.msra.mxu0 0.0
        %1338 = vmatprep.subr.mxu0 0.0
        %1339 = vmatpush2.msra.mxu0 0.0
        %1340 = vmatprep.subr.mxu0 0.0
        %1341 = vmatpush2.msra.mxu0 0.0
        %1342 = vmatprep.subr.mxu0 0.0
        %1343 = vmatpush2.msra.mxu0 0.0
        %1344 = vmatprep.subr.mxu0 0.0
        %1345 = vmatpush2.msra.mxu0 0.0
        %1346 = vmatprep.subr.mxu0 0.0
        %1347 = vmatpush2.msra.mxu0 0.0
        %1348 = vmatprep.subr.mxu0 0.0
        %1349 = vmatpush2.msra.mxu0 0.0
        %1350 = vmatprep.subr.mxu0 0.0
        %1351 = vmatpush2.msra.mxu0 0.0
        %1352 = vmatprep.subr.mxu0 0.0
        %1353 = vmatpush2.msra.mxu0 0.0
        %1354 = vmatprep.subr.mxu0 0.0
        %1355 = vmatpush2.msra.mxu0 0.0
        %1356 = vmatprep.subr.mxu0 0.0
        %1357 = vmatpush2.msra.mxu0 0.0
        %1358 = vmatprep.subr.mxu0 0.0
        %1359 = vmatpush2.msra.mxu0 0.0
        %1360 = vmatprep.subr.mxu0 0.0
        %1361 = vmatpush2.msra.mxu0 0.0
        %1362 = vmatprep.subr.mxu0 0.0
        %1363 = vmatpush2.msra.mxu0 0.0
        %1364 = vmatprep.mubr.f32.mxu0 0.0
        %1365 = vmatmul.mubr.f32.gmra.mxu0 %v1158
        %v1366 = vpop.f32.mrf.mxu0
        %v1367 = vadd.f32 %v1297, %v1366
        %v1368 = vpop.f32.mrf.mxu0
        %1369 = vdwg.mxu0
        %1370 = vst [vmem:[%s217] sm:$0xff] %v1367
        %s1371 = sand.u32 %s137, 1
        %s1372 = scalar_lea.sflag [#allocation3], %s1371
        %s1373 = sand.u32 %s137, 1
        %s1374 = smul.addr %s1373, 8
        %s1375 = scalar_lea.vmem [#allocation2], %s1374
        // Predicated region
        $region41: #{tpu_custom_call.1} parent=39 // pred_check
          %p1376 = pneg %p147
        $region42: #{tpu_custom_call.1} parent=39 // pred_check_branch
          %1378 = sbr.rel (%p1376) target = $region44
        $region43: #{tpu_custom_call.1} parent=39 // pred_region
          %s1380 = ssub.s32 128, 128
          %1381 = vsyncadd %s1372, %s1380
          %s1382 = smul.addr %s19, 128
          %s1383 = scalar_lea.hbm %s5, %s1382
          %s1385 = sshll.u32 %s1375, 4
          %s1386 = int_to_ptr.vmem [resolvable:$true] %s1385
          %1388 = dma.vmem_to_hbm [thread:$0]  %s1386, 128, %s1383, %s1372
        $region44: #{tpu_custom_call.1} parent=39 // pred_fallthru
          _
      $region40: #{tpu_custom_call.1} parent=5 // pred_fallthru
        _
      %p1389 = scmp.le.s32.totalorder 2, %s14
      // Predicated region
      $region45: #{tpu_custom_call.1} parent=5 // pred_check
        %p1390 = pneg %p1389
      $region46: #{tpu_custom_call.1} parent=5 // pred_check_branch
        %1392 = sbr.rel (%p1390) target = $region48
      $region47: #{tpu_custom_call.1} parent=5 // pred_region
        %s1393 = ssub.s32 %s14, 2
        // Predicated region
        $region49: #{tpu_custom_call.1} parent=47 // pred_check
          %p1394 = pneg %p153
        $region50: #{tpu_custom_call.1} parent=47 // pred_check_branch
          %1396 = sbr.rel (%p1394) target = $region52
        $region51: #{tpu_custom_call.1} parent=47 // pred_region
          %s1397 = sand.u32 %s138, 1
          %s1398 = scalar_lea.sflag [#allocation3], %s1397
          %s1399 = sand.u32 %s138, 1
          %s1400 = smul.addr %s1399, 8
          %s1401 = scalar_lea.vmem [#allocation2], %s1400
          %1402 = dma.done %s1398, 128
        $region52: #{tpu_custom_call.1} parent=47 // pred_fallthru
          _
      $region48: #{tpu_custom_call.1} parent=5 // pred_fallthru
        _
    $region6: #{tpu_custom_call.1} parent=1 // loop_footer
      %s18 = sadd.s32 1, %s14
    $region7: #{tpu_custom_call.1} parent=1 // loop_footer_branch
      %13 = sbr.rel target = $region3
    $region8: #{tpu_custom_call.1} parent=1 // loop_exit
      _
    %1403 = vsyncpa [#allocation3], 1
    %s1404 = scalar_lea.sflag [#allocation3], 1
    %1405 = vsyncpa %s1404, 1

</llo_original>
